<compile_context>
chip_gen: v7x
topology: tpu7x:2x2x1
jax: 0.10.0
libtpu: 0.0.40
codegen_flags: <defaults>
</compile_context>

<pallas_src>
import jax
import jax.numpy as jnp
from jax import lax
from jax.experimental import pallas as pl
from jax.experimental.pallas import tpu as pltpu
import numpy as np


_LANE = 128
_MAX_TB = 2048          # lane-dense batch tile cap (keeps per-step VMEM ~ a few MiB)
_MAX_FUSED_VOCAB = 1024  # padded vocab above which the table is not kept in VMEM


def _round_up(x, m):
    return -(-x // m) * m


def _choose_tile(batch, vp):
    """Pick the lane-axis batch tile TB and the padded batch size.

    - TB is a multiple of 128 (batch lives on the 128-lane axis in-kernel).
    - TB is capped so the (Vp, TB) one-hot + intermediates stay a few MiB.
    - Once the padded batch spans >= 2 tiles we guarantee >= 2 grid steps so
      ("parallel",) can shard the grid across both v7x TensorCores.
    """
    onehot_cap = max(_LANE, (2 * 1024 * 1024 // (4 * vp)) // _LANE * _LANE)
    max_tb = min(_MAX_TB, onehot_cap)
    b128 = _round_up(batch, _LANE)
    if b128 <= _LANE:
        tb = _LANE
    else:
        tb = max(_LANE, min(max_tb, (b128 // 2) // _LANE * _LANE))
    return tb, _round_up(batch, tb)


def lorentz_fused_kernel(idx_ref, thi_ref, tlo_ref, o_ref):
    """Fused embedding-gather + Lorentz ranking loss for one batch tile.

    Batch-on-lanes layout:
      idx_ref : (N+1, TB) int32   row 0 = query index, rows 1..N = neighbours
      thi_ref : (D, Vp)  float32  bf16-exact "hi" half of table.T (VMEM-resident)
      tlo_ref : (D, Vp)  float32  exact residual "lo" half of table.T
      o_ref   : (1, TB)  float32  per-row ranking loss (lane-dense store)
    """
    n_plus_1, tb = idx_ref.shape
    d_dim, vp = thi_ref.shape

    thi = thi_ref[...]                                        # (D, Vp)
    tlo = tlo_ref[...]                                        # (D, Vp)
    iota_v = lax.broadcasted_iota(jnp.int32, (vp, tb), 0)     # hoisted, reused 9x

    def gather(n):
        # One-hot MXU gather: emb[:, b] = table[idx[n, b], :], result (D, TB).
        # hi is exactly bf16-representable and the one-hot is exactly 0/1, so
        # the gathered value matches the f32 table entry to ~2^-17 relative
        # regardless of how the f32 matmul is decomposed internally.
        row = idx_ref[n:n + 1, :]                             # (1, TB)
        onehot = (iota_v == row).astype(jnp.float32)          # (Vp, TB)
        emb = jnp.dot(thi, onehot, preferred_element_type=jnp.float32)
        emb = emb + jnp.dot(tlo, onehot, preferred_element_type=jnp.float32)
        return emb                                            # (D, TB)

    ui = gather(0)                                            # query embedding
    # Keep the reference association of the Lorentz scalar product:
    #   lsp = sum_{d>=1} ui_d*uk_d - ui_0*uk_0
    # The ~1-magnitude time term is subtracted exactly once; folding it into
    # the tiny-term sum is amplified ~100-1000x by arcosh near 1 and breaks
    # tolerance.  Row-0 mask of the query is hoisted out of the loop.
    is_time = lax.broadcasted_iota(jnp.int32, (d_dim, tb), 0) == 0
    ui_sp = jnp.where(is_time, 0.0, ui)                       # spatial rows, row 0 = 0
    ui_t = ui[0:1, :]                                         # (1, TB) time row

    d_pos = None
    sum_exp = None
    for n in range(1, n_plus_1):
        uk = gather(n)                                        # (D, TB)
        rest = jnp.sum(ui_sp * uk, axis=0, keepdims=True)     # sum over d >= 1
        m0 = ui_t * uk[0:1, :]                                # direct time-term slice
        dist = m0 - rest                                      # = -lorentz_scalar_product
        dist = jnp.where(dist <= 1.0, jnp.float32(1.0 + 1e-6), dist)
        dist = -jnp.log(dist + jnp.sqrt(dist * dist - 1.0))   # -arcosh(dist)
        e = jnp.exp(dist)
        sum_exp = e if sum_exp is None else sum_exp + e
        if n == 1:
            d_pos = dist                                      # first neighbour = positive

    o_ref[...] = -(d_pos - jnp.log(sum_exp + 1e-6))           # (1, TB) lane-dense


def lorentz_loss_pallas(table, I, Ks):
    V, D = table.shape
    (B,) = I.shape
    Bk, N = Ks.shape
    assert Bk == B
    vp = _round_up(V, _LANE)
    tb, b_pad = _choose_tile(B, vp)
    n_plus_1 = N + 1

    # Exact hi/lo split of the table (hi = f32(bf16(t)) exact, lo = t - hi
    # exact by Sterbenz); transposed to (D, V) so gathered embeddings come out
    # batch-on-lanes, padded to a lane multiple of 128 along V.
    table = table.astype(jnp.float32)
    t_hi = table.astype(jnp.bfloat16).astype(jnp.float32)
    t_lo = table - t_hi
    pad_v = ((0, 0), (0, vp - V))
    thi_t = jnp.pad(t_hi.T, pad_v)                            # (D, Vp)
    tlo_t = jnp.pad(t_lo.T, pad_v)                            # (D, Vp)

    # Indices: row 0 = query, rows 1..N = neighbours  -> (N+1, B), padded along
    # the batch (lane) axis with index 0 (the module's padding row; results for
    # padded lanes are finite and sliced off below).
    idx = jnp.concatenate(
        [I[None, :].astype(jnp.int32), Ks.T.astype(jnp.int32)], axis=0)
    if b_pad != B:
        idx = jnp.pad(idx, ((0, 0), (0, b_pad - B)))

    grid = (b_pad // tb,)
    cost = pl.CostEstimate(
        flops=int(b_pad) * (4 * D * vp * n_plus_1 + 4 * D * N),
        transcendentals=int(b_pad) * (3 * N + 1),
        bytes_accessed=int(b_pad) * (4 * n_plus_1 + 4) + 2 * 4 * D * vp,
    )

    out = pl.pallas_call(
        lorentz_fused_kernel,
        out_shape=jax.ShapeDtypeStruct((1, b_pad), jnp.float32),
        grid_spec=pltpu.PrefetchScalarGridSpec(
            num_scalar_prefetch=0,
            grid=grid,
            in_specs=[
                pl.BlockSpec((n_plus_1, tb), lambda i: (0, i)),  # indices
                pl.BlockSpec((D, vp), lambda i: (0, 0)),         # table hi (resident)
                pl.BlockSpec((D, vp), lambda i: (0, 0)),         # table lo (resident)
            ],
            out_specs=pl.BlockSpec((1, tb), lambda i: (0, i)),   # lane-dense output
        ),
        compiler_params=pltpu.CompilerParams(
            dimension_semantics=("parallel",)),
        cost_estimate=cost,
    )(idx, thi_t, tlo_t)
    return out[0, :B]


# ---------------- parameter / table construction (plain JAX glue) -----------

def make_lorentz_table(key, n_items, dim, init_range=0.001):
    # nn.init.uniform_(weight, -init_range, init_range); weight[0] = 5; set_dim0
    table = jax.random.uniform(
        key, (n_items + 1, dim), dtype=jnp.float32,
        minval=-init_range, maxval=init_range)
    table = table.at[0].set(5.0)
    norms = jnp.sqrt(jnp.sum(table * table, axis=1, keepdims=True))
    table = jnp.where(norms > 100.0, table * (100.0 / norms), table)
    dim0 = jnp.sqrt(1.0 + jnp.sum(table[:, 1:] ** 2, axis=1))
    table = table.at[:, 0].set(dim0)
    return table


@jax.jit
def lorentz_forward(table, I, Ks):
    V = table.shape[0]
    if _round_up(V, _LANE) <= _MAX_FUSED_VOCAB:
        return lorentz_loss_pallas(table, I, Ks)
    # TODO(synk): for vocabularies too large to keep resident in VMEM, add an
    # unfused lane-dense Pallas kernel (XLA gather outside) or an in-kernel DMA
    # row gather; until then fall back to the plain-JAX reference path.
    return lorentz_forward_ref(table, I, Ks)


# ---------------- pure-JAX reference for validation -------------------------

def lorentz_forward_ref(table, I, Ks):
    B, N = Ks.shape
    D = table.shape[1]
    ui = jnp.broadcast_to(table[I][:, None, :], (B, N, D)).reshape(B * N, D)
    uks = table[Ks].reshape(B * N, D)
    m = ui * uks
    lsp = jnp.sum(m[:, 1:], axis=1) - m[:, 0]
    dists = -lsp
    dists = jnp.where(dists <= 1.0, 1.0 + 1e-6, dists)
    dists = -jnp.log(dists + jnp.sqrt(dists ** 2 - 1.0))
    dists = dists.reshape(B, N)
    loss = -(dists[:, 0] - jnp.log(jnp.sum(jnp.exp(dists), axis=1) + 1e-6))
    return loss


if __name__ == "__main__":
    n_items = 100
    dim = 32        # hidden
    B = 8           # batch
    N = 8           # neighbours per query

    key = jax.random.PRNGKey(0)
    k_tab, k_i, k_ks = jax.random.split(key, 3)

    table = make_lorentz_table(k_tab, n_items, dim)
    I = jax.random.randint(k_i, (B,), 1, n_items + 1, dtype=jnp.int32)
    # Neighbour candidates exclude the query itself (as in the intended usage;
    # i == j makes dist land exactly on the arcosh clamp boundary, where a
    # single ulp legitimately flips the branch in any implementation).
    Ks = jax.random.randint(k_ks, (B, N), 1, n_items, dtype=jnp.int32)
    Ks = Ks + (Ks >= I[:, None]).astype(jnp.int32)

    loss = jax.block_until_ready(lorentz_forward(table, I, Ks))
    ref = jax.block_until_ready(lorentz_forward_ref(table, I, Ks))

    assert loss.shape == (B,)
    # arcosh'(x) = 1/sqrt(x^2-1) is O(1e2-1e3) when x is within ~1e-5 of 1 (the
    # regime of near-origin random embeddings), so single-ulp differences in the
    # scalar product can legitimately appear at the ~1e-5 level in the loss.
    np.testing.assert_allclose(np.asarray(loss), np.asarray(ref),
                               rtol=1e-4, atol=1e-5)
    print("KERNEL_OK")
</pallas_src>

<mosaic_0001>
module attributes {stable_mosaic.version = 11 : i64} {
  func.func @lorentz_fused_kernel(%arg0: i32, %arg1: memref<9x128xi32, #tpu.memory_space<vmem>>, %arg2: memref<32x128xf32, #tpu.memory_space<vmem>>, %arg3: memref<32x128xf32, #tpu.memory_space<vmem>>, %arg4: memref<1x128xf32, #tpu.memory_space<vmem>>) attributes {dimension_semantics = [#tpu.dimension_semantics<parallel>], iteration_bounds = array<i64: 1>, scalar_prefetch = 0 : i64, scratch_operands = 0 : i64, tpu.core_type = #tpu.core_type<tc>, window_params = [{transform_indices = @transform_0, window_bounds = array<i64: 9, 128>}, {pipeline_mode = #tpu.pipeline_mode<synchronous>, transform_indices = @transform_1, window_bounds = array<i64: 32, 128>}, {pipeline_mode = #tpu.pipeline_mode<synchronous>, transform_indices = @transform_2, window_bounds = array<i64: 32, 128>}, {transform_indices = @transform_3, window_bounds = array<i64: 1, 128>}]} {
    %c0 = arith.constant 0 : index
    %c0_0 = arith.constant 0 : index
    %0 = vector.load %arg2[%c0, %c0_0] : memref<32x128xf32, #tpu.memory_space<vmem>>, vector<32x128xf32>
    %c0_1 = arith.constant 0 : index
    %c0_2 = arith.constant 0 : index
    %1 = vector.load %arg3[%c0_1, %c0_2] : memref<32x128xf32, #tpu.memory_space<vmem>>, vector<32x128xf32>
    %2 = tpu.iota {dimensions = array<i32: 0>} : vector<128x128xi32>
    %c0_3 = arith.constant 0 : index
    %c0_4 = arith.constant 0 : index
    %3 = vector.load %arg1[%c0_3, %c0_4] : memref<9x128xi32, #tpu.memory_space<vmem>>, vector<1x128xi32>
    %4 = vector.broadcast %3 : vector<1x128xi32> to vector<128x128xi32>
    %5 = arith.cmpi eq, %2, %4 : vector<128x128xi32>
    %6 = arith.extui %5 : vector<128x128xi1> to vector<128x128xi32>
    %7 = arith.sitofp %6 : vector<128x128xi32> to vector<128x128xf32>
    %cst = arith.constant dense<0.000000e+00> : vector<32x128xf32>
    %8 = tpu.matmul %0, %7, %cst {dimension_numbers = #tpu.dot_dimension_numbers<[1], [0], [0], [1], [0, 0, 1, 1], [], []>} : vector<32x128xf32>, vector<128x128xf32>, vector<32x128xf32> -> vector<32x128xf32>
    %cst_5 = arith.constant dense<0.000000e+00> : vector<32x128xf32>
    %9 = tpu.matmul %1, %7, %cst_5 {dimension_numbers = #tpu.dot_dimension_numbers<[1], [0], [0], [1], [0, 0, 1, 1], [], []>} : vector<32x128xf32>, vector<128x128xf32>, vector<32x128xf32> -> vector<32x128xf32>
    %10 = arith.addf %8, %9 : vector<32x128xf32>
    %11 = tpu.iota {dimensions = array<i32: 0>} : vector<32x128xi32>
    %c0_i32 = arith.constant 0 : i32
    %12 = vector.broadcast %c0_i32 : i32 to vector<32x128xi32>
    %13 = arith.cmpi eq, %11, %12 : vector<32x128xi32>
    %cst_6 = arith.constant 0.000000e+00 : f32
    %14 = vector.broadcast %cst_6 : f32 to vector<32x128xf32>
    %15 = arith.select %13, %14, %10 : vector<32x128xi1>, vector<32x128xf32>
    %16 = vector.extract_strided_slice %10 {offsets = [0, 0], sizes = [1, 128], strides = [1, 1]} : vector<32x128xf32> to vector<1x128xf32>
    %c1 = arith.constant 1 : index
    %c0_7 = arith.constant 0 : index
    %17 = vector.load %arg1[%c1, %c0_7] : memref<9x128xi32, #tpu.memory_space<vmem>>, vector<1x128xi32>
    %18 = vector.broadcast %17 : vector<1x128xi32> to vector<128x128xi32>
    %19 = arith.cmpi eq, %2, %18 : vector<128x128xi32>
    %20 = arith.extui %19 : vector<128x128xi1> to vector<128x128xi32>
    %21 = arith.sitofp %20 : vector<128x128xi32> to vector<128x128xf32>
    %cst_8 = arith.constant dense<0.000000e+00> : vector<32x128xf32>
    %22 = tpu.matmul %0, %21, %cst_8 {dimension_numbers = #tpu.dot_dimension_numbers<[1], [0], [0], [1], [0, 0, 1, 1], [], []>} : vector<32x128xf32>, vector<128x128xf32>, vector<32x128xf32> -> vector<32x128xf32>
    %cst_9 = arith.constant dense<0.000000e+00> : vector<32x128xf32>
    %23 = tpu.matmul %1, %21, %cst_9 {dimension_numbers = #tpu.dot_dimension_numbers<[1], [0], [0], [1], [0, 0, 1, 1], [], []>} : vector<32x128xf32>, vector<128x128xf32>, vector<32x128xf32> -> vector<32x128xf32>
    %24 = arith.addf %22, %23 : vector<32x128xf32>
    %25 = arith.mulf %15, %24 : vector<32x128xf32>
    %cst_10 = arith.constant dense<0.000000e+00> : vector<128xf32>
    %26 = vector.multi_reduction <add>, %25, %cst_10 [0] : vector<32x128xf32> to vector<128xf32>
    %27 = vector.shape_cast %26 : vector<128xf32> to vector<1x128xf32>
    %28 = vector.extract_strided_slice %24 {offsets = [0, 0], sizes = [1, 128], strides = [1, 1]} : vector<32x128xf32> to vector<1x128xf32>
    %29 = arith.mulf %16, %28 : vector<1x128xf32>
    %30 = arith.subf %29, %27 : vector<1x128xf32>
    %cst_11 = arith.constant 1.000000e+00 : f32
    %31 = vector.broadcast %cst_11 : f32 to vector<1x128xf32>
    %32 = arith.cmpf ole, %30, %31 : vector<1x128xf32>
    %cst_12 = arith.constant 1.00000095 : f32
    %33 = vector.broadcast %cst_12 : f32 to vector<1x128xf32>
    %34 = arith.select %32, %33, %30 : vector<1x128xi1>, vector<1x128xf32>
    %35 = arith.mulf %34, %34 : vector<1x128xf32>
    %cst_13 = arith.constant 1.000000e+00 : f32
    %36 = vector.broadcast %cst_13 : f32 to vector<1x128xf32>
    %37 = arith.subf %35, %36 : vector<1x128xf32>
    %38 = math.sqrt %37 : vector<1x128xf32>
    %39 = arith.addf %34, %38 : vector<1x128xf32>
    %40 = math.log %39 : vector<1x128xf32>
    %cst_14 = arith.constant 0.000000e+00 : f32
    %41 = vector.broadcast %cst_14 : f32 to vector<1x128xf32>
    %42 = arith.subf %41, %40 : vector<1x128xf32>
    %43 = math.exp %42 : vector<1x128xf32>
    %c2 = arith.constant 2 : index
    %c0_15 = arith.constant 0 : index
    %44 = vector.load %arg1[%c2, %c0_15] : memref<9x128xi32, #tpu.memory_space<vmem>>, vector<1x128xi32>
    %45 = vector.broadcast %44 : vector<1x128xi32> to vector<128x128xi32>
    %46 = arith.cmpi eq, %2, %45 : vector<128x128xi32>
    %47 = arith.extui %46 : vector<128x128xi1> to vector<128x128xi32>
    %48 = arith.sitofp %47 : vector<128x128xi32> to vector<128x128xf32>
    %cst_16 = arith.constant dense<0.000000e+00> : vector<32x128xf32>
    %49 = tpu.matmul %0, %48, %cst_16 {dimension_numbers = #tpu.dot_dimension_numbers<[1], [0], [0], [1], [0, 0, 1, 1], [], []>} : vector<32x128xf32>, vector<128x128xf32>, vector<32x128xf32> -> vector<32x128xf32>
    %cst_17 = arith.constant dense<0.000000e+00> : vector<32x128xf32>
    %50 = tpu.matmul %1, %48, %cst_17 {dimension_numbers = #tpu.dot_dimension_numbers<[1], [0], [0], [1], [0, 0, 1, 1], [], []>} : vector<32x128xf32>, vector<128x128xf32>, vector<32x128xf32> -> vector<32x128xf32>
    %51 = arith.addf %49, %50 : vector<32x128xf32>
    %52 = arith.mulf %15, %51 : vector<32x128xf32>
    %cst_18 = arith.constant dense<0.000000e+00> : vector<128xf32>
    %53 = vector.multi_reduction <add>, %52, %cst_18 [0] : vector<32x128xf32> to vector<128xf32>
    %54 = vector.shape_cast %53 : vector<128xf32> to vector<1x128xf32>
    %55 = vector.extract_strided_slice %51 {offsets = [0, 0], sizes = [1, 128], strides = [1, 1]} : vector<32x128xf32> to vector<1x128xf32>
    %56 = arith.mulf %16, %55 : vector<1x128xf32>
    %57 = arith.subf %56, %54 : vector<1x128xf32>
    %cst_19 = arith.constant 1.000000e+00 : f32
    %58 = vector.broadcast %cst_19 : f32 to vector<1x128xf32>
    %59 = arith.cmpf ole, %57, %58 : vector<1x128xf32>
    %cst_20 = arith.constant 1.00000095 : f32
    %60 = vector.broadcast %cst_20 : f32 to vector<1x128xf32>
    %61 = arith.select %59, %60, %57 : vector<1x128xi1>, vector<1x128xf32>
    %62 = arith.mulf %61, %61 : vector<1x128xf32>
    %cst_21 = arith.constant 1.000000e+00 : f32
    %63 = vector.broadcast %cst_21 : f32 to vector<1x128xf32>
    %64 = arith.subf %62, %63 : vector<1x128xf32>
    %65 = math.sqrt %64 : vector<1x128xf32>
    %66 = arith.addf %61, %65 : vector<1x128xf32>
    %67 = math.log %66 : vector<1x128xf32>
    %cst_22 = arith.constant 0.000000e+00 : f32
    %68 = vector.broadcast %cst_22 : f32 to vector<1x128xf32>
    %69 = arith.subf %68, %67 : vector<1x128xf32>
    %70 = math.exp %69 : vector<1x128xf32>
    %71 = arith.addf %43, %70 : vector<1x128xf32>
    %c3 = arith.constant 3 : index
    %c0_23 = arith.constant 0 : index
    %72 = vector.load %arg1[%c3, %c0_23] : memref<9x128xi32, #tpu.memory_space<vmem>>, vector<1x128xi32>
    %73 = vector.broadcast %72 : vector<1x128xi32> to vector<128x128xi32>
    %74 = arith.cmpi eq, %2, %73 : vector<128x128xi32>
    %75 = arith.extui %74 : vector<128x128xi1> to vector<128x128xi32>
    %76 = arith.sitofp %75 : vector<128x128xi32> to vector<128x128xf32>
    %cst_24 = arith.constant dense<0.000000e+00> : vector<32x128xf32>
    %77 = tpu.matmul %0, %76, %cst_24 {dimension_numbers = #tpu.dot_dimension_numbers<[1], [0], [0], [1], [0, 0, 1, 1], [], []>} : vector<32x128xf32>, vector<128x128xf32>, vector<32x128xf32> -> vector<32x128xf32>
    %cst_25 = arith.constant dense<0.000000e+00> : vector<32x128xf32>
    %78 = tpu.matmul %1, %76, %cst_25 {dimension_numbers = #tpu.dot_dimension_numbers<[1], [0], [0], [1], [0, 0, 1, 1], [], []>} : vector<32x128xf32>, vector<128x128xf32>, vector<32x128xf32> -> vector<32x128xf32>
    %79 = arith.addf %77, %78 : vector<32x128xf32>
    %80 = arith.mulf %15, %79 : vector<32x128xf32>
    %cst_26 = arith.constant dense<0.000000e+00> : vector<128xf32>
    %81 = vector.multi_reduction <add>, %80, %cst_26 [0] : vector<32x128xf32> to vector<128xf32>
    %82 = vector.shape_cast %81 : vector<128xf32> to vector<1x128xf32>
    %83 = vector.extract_strided_slice %79 {offsets = [0, 0], sizes = [1, 128], strides = [1, 1]} : vector<32x128xf32> to vector<1x128xf32>
    %84 = arith.mulf %16, %83 : vector<1x128xf32>
    %85 = arith.subf %84, %82 : vector<1x128xf32>
    %cst_27 = arith.constant 1.000000e+00 : f32
    %86 = vector.broadcast %cst_27 : f32 to vector<1x128xf32>
    %87 = arith.cmpf ole, %85, %86 : vector<1x128xf32>
    %cst_28 = arith.constant 1.00000095 : f32
    %88 = vector.broadcast %cst_28 : f32 to vector<1x128xf32>
    %89 = arith.select %87, %88, %85 : vector<1x128xi1>, vector<1x128xf32>
    %90 = arith.mulf %89, %89 : vector<1x128xf32>
    %cst_29 = arith.constant 1.000000e+00 : f32
    %91 = vector.broadcast %cst_29 : f32 to vector<1x128xf32>
    %92 = arith.subf %90, %91 : vector<1x128xf32>
    %93 = math.sqrt %92 : vector<1x128xf32>
    %94 = arith.addf %89, %93 : vector<1x128xf32>
    %95 = math.log %94 : vector<1x128xf32>
    %cst_30 = arith.constant 0.000000e+00 : f32
    %96 = vector.broadcast %cst_30 : f32 to vector<1x128xf32>
    %97 = arith.subf %96, %95 : vector<1x128xf32>
    %98 = math.exp %97 : vector<1x128xf32>
    %99 = arith.addf %71, %98 : vector<1x128xf32>
    %c4 = arith.constant 4 : index
    %c0_31 = arith.constant 0 : index
    %100 = vector.load %arg1[%c4, %c0_31] : memref<9x128xi32, #tpu.memory_space<vmem>>, vector<1x128xi32>
    %101 = vector.broadcast %100 : vector<1x128xi32> to vector<128x128xi32>
    %102 = arith.cmpi eq, %2, %101 : vector<128x128xi32>
    %103 = arith.extui %102 : vector<128x128xi1> to vector<128x128xi32>
    %104 = arith.sitofp %103 : vector<128x128xi32> to vector<128x128xf32>
    %cst_32 = arith.constant dense<0.000000e+00> : vector<32x128xf32>
    %105 = tpu.matmul %0, %104, %cst_32 {dimension_numbers = #tpu.dot_dimension_numbers<[1], [0], [0], [1], [0, 0, 1, 1], [], []>} : vector<32x128xf32>, vector<128x128xf32>, vector<32x128xf32> -> vector<32x128xf32>
    %cst_33 = arith.constant dense<0.000000e+00> : vector<32x128xf32>
    %106 = tpu.matmul %1, %104, %cst_33 {dimension_numbers = #tpu.dot_dimension_numbers<[1], [0], [0], [1], [0, 0, 1, 1], [], []>} : vector<32x128xf32>, vector<128x128xf32>, vector<32x128xf32> -> vector<32x128xf32>
    %107 = arith.addf %105, %106 : vector<32x128xf32>
    %108 = arith.mulf %15, %107 : vector<32x128xf32>
    %cst_34 = arith.constant dense<0.000000e+00> : vector<128xf32>
    %109 = vector.multi_reduction <add>, %108, %cst_34 [0] : vector<32x128xf32> to vector<128xf32>
    %110 = vector.shape_cast %109 : vector<128xf32> to vector<1x128xf32>
    %111 = vector.extract_strided_slice %107 {offsets = [0, 0], sizes = [1, 128], strides = [1, 1]} : vector<32x128xf32> to vector<1x128xf32>
    %112 = arith.mulf %16, %111 : vector<1x128xf32>
    %113 = arith.subf %112, %110 : vector<1x128xf32>
    %cst_35 = arith.constant 1.000000e+00 : f32
    %114 = vector.broadcast %cst_35 : f32 to vector<1x128xf32>
    %115 = arith.cmpf ole, %113, %114 : vector<1x128xf32>
    %cst_36 = arith.constant 1.00000095 : f32
    %116 = vector.broadcast %cst_36 : f32 to vector<1x128xf32>
    %117 = arith.select %115, %116, %113 : vector<1x128xi1>, vector<1x128xf32>
    %118 = arith.mulf %117, %117 : vector<1x128xf32>
    %cst_37 = arith.constant 1.000000e+00 : f32
    %119 = vector.broadcast %cst_37 : f32 to vector<1x128xf32>
    %120 = arith.subf %118, %119 : vector<1x128xf32>
    %121 = math.sqrt %120 : vector<1x128xf32>
    %122 = arith.addf %117, %121 : vector<1x128xf32>
    %123 = math.log %122 : vector<1x128xf32>
    %cst_38 = arith.constant 0.000000e+00 : f32
    %124 = vector.broadcast %cst_38 : f32 to vector<1x128xf32>
    %125 = arith.subf %124, %123 : vector<1x128xf32>
    %126 = math.exp %125 : vector<1x128xf32>
    %127 = arith.addf %99, %126 : vector<1x128xf32>
    %c5 = arith.constant 5 : index
    %c0_39 = arith.constant 0 : index
    %128 = vector.load %arg1[%c5, %c0_39] : memref<9x128xi32, #tpu.memory_space<vmem>>, vector<1x128xi32>
    %129 = vector.broadcast %128 : vector<1x128xi32> to vector<128x128xi32>
    %130 = arith.cmpi eq, %2, %129 : vector<128x128xi32>
    %131 = arith.extui %130 : vector<128x128xi1> to vector<128x128xi32>
    %132 = arith.sitofp %131 : vector<128x128xi32> to vector<128x128xf32>
    %cst_40 = arith.constant dense<0.000000e+00> : vector<32x128xf32>
    %133 = tpu.matmul %0, %132, %cst_40 {dimension_numbers = #tpu.dot_dimension_numbers<[1], [0], [0], [1], [0, 0, 1, 1], [], []>} : vector<32x128xf32>, vector<128x128xf32>, vector<32x128xf32> -> vector<32x128xf32>
    %cst_41 = arith.constant dense<0.000000e+00> : vector<32x128xf32>
    %134 = tpu.matmul %1, %132, %cst_41 {dimension_numbers = #tpu.dot_dimension_numbers<[1], [0], [0], [1], [0, 0, 1, 1], [], []>} : vector<32x128xf32>, vector<128x128xf32>, vector<32x128xf32> -> vector<32x128xf32>
    %135 = arith.addf %133, %134 : vector<32x128xf32>
    %136 = arith.mulf %15, %135 : vector<32x128xf32>
    %cst_42 = arith.constant dense<0.000000e+00> : vector<128xf32>
    %137 = vector.multi_reduction <add>, %136, %cst_42 [0] : vector<32x128xf32> to vector<128xf32>
    %138 = vector.shape_cast %137 : vector<128xf32> to vector<1x128xf32>
    %139 = vector.extract_strided_slice %135 {offsets = [0, 0], sizes = [1, 128], strides = [1, 1]} : vector<32x128xf32> to vector<1x128xf32>
    %140 = arith.mulf %16, %139 : vector<1x128xf32>
    %141 = arith.subf %140, %138 : vector<1x128xf32>
    %cst_43 = arith.constant 1.000000e+00 : f32
    %142 = vector.broadcast %cst_43 : f32 to vector<1x128xf32>
    %143 = arith.cmpf ole, %141, %142 : vector<1x128xf32>
    %cst_44 = arith.constant 1.00000095 : f32
    %144 = vector.broadcast %cst_44 : f32 to vector<1x128xf32>
    %145 = arith.select %143, %144, %141 : vector<1x128xi1>, vector<1x128xf32>
    %146 = arith.mulf %145, %145 : vector<1x128xf32>
    %cst_45 = arith.constant 1.000000e+00 : f32
    %147 = vector.broadcast %cst_45 : f32 to vector<1x128xf32>
    %148 = arith.subf %146, %147 : vector<1x128xf32>
    %149 = math.sqrt %148 : vector<1x128xf32>
    %150 = arith.addf %145, %149 : vector<1x128xf32>
    %151 = math.log %150 : vector<1x128xf32>
    %cst_46 = arith.constant 0.000000e+00 : f32
    %152 = vector.broadcast %cst_46 : f32 to vector<1x128xf32>
    %153 = arith.subf %152, %151 : vector<1x128xf32>
    %154 = math.exp %153 : vector<1x128xf32>
    %155 = arith.addf %127, %154 : vector<1x128xf32>
    %c6 = arith.constant 6 : index
    %c0_47 = arith.constant 0 : index
    %156 = vector.load %arg1[%c6, %c0_47] : memref<9x128xi32, #tpu.memory_space<vmem>>, vector<1x128xi32>
    %157 = vector.broadcast %156 : vector<1x128xi32> to vector<128x128xi32>
    %158 = arith.cmpi eq, %2, %157 : vector<128x128xi32>
    %159 = arith.extui %158 : vector<128x128xi1> to vector<128x128xi32>
    %160 = arith.sitofp %159 : vector<128x128xi32> to vector<128x128xf32>
    %cst_48 = arith.constant dense<0.000000e+00> : vector<32x128xf32>
    %161 = tpu.matmul %0, %160, %cst_48 {dimension_numbers = #tpu.dot_dimension_numbers<[1], [0], [0], [1], [0, 0, 1, 1], [], []>} : vector<32x128xf32>, vector<128x128xf32>, vector<32x128xf32> -> vector<32x128xf32>
    %cst_49 = arith.constant dense<0.000000e+00> : vector<32x128xf32>
    %162 = tpu.matmul %1, %160, %cst_49 {dimension_numbers = #tpu.dot_dimension_numbers<[1], [0], [0], [1], [0, 0, 1, 1], [], []>} : vector<32x128xf32>, vector<128x128xf32>, vector<32x128xf32> -> vector<32x128xf32>
    %163 = arith.addf %161, %162 : vector<32x128xf32>
    %164 = arith.mulf %15, %163 : vector<32x128xf32>
    %cst_50 = arith.constant dense<0.000000e+00> : vector<128xf32>
    %165 = vector.multi_reduction <add>, %164, %cst_50 [0] : vector<32x128xf32> to vector<128xf32>
    %166 = vector.shape_cast %165 : vector<128xf32> to vector<1x128xf32>
    %167 = vector.extract_strided_slice %163 {offsets = [0, 0], sizes = [1, 128], strides = [1, 1]} : vector<32x128xf32> to vector<1x128xf32>
    %168 = arith.mulf %16, %167 : vector<1x128xf32>
    %169 = arith.subf %168, %166 : vector<1x128xf32>
    %cst_51 = arith.constant 1.000000e+00 : f32
    %170 = vector.broadcast %cst_51 : f32 to vector<1x128xf32>
    %171 = arith.cmpf ole, %169, %170 : vector<1x128xf32>
    %cst_52 = arith.constant 1.00000095 : f32
    %172 = vector.broadcast %cst_52 : f32 to vector<1x128xf32>
    %173 = arith.select %171, %172, %169 : vector<1x128xi1>, vector<1x128xf32>
    %174 = arith.mulf %173, %173 : vector<1x128xf32>
    %cst_53 = arith.constant 1.000000e+00 : f32
    %175 = vector.broadcast %cst_53 : f32 to vector<1x128xf32>
    %176 = arith.subf %174, %175 : vector<1x128xf32>
    %177 = math.sqrt %176 : vector<1x128xf32>
    %178 = arith.addf %173, %177 : vector<1x128xf32>
    %179 = math.log %178 : vector<1x128xf32>
    %cst_54 = arith.constant 0.000000e+00 : f32
    %180 = vector.broadcast %cst_54 : f32 to vector<1x128xf32>
    %181 = arith.subf %180, %179 : vector<1x128xf32>
    %182 = math.exp %181 : vector<1x128xf32>
    %183 = arith.addf %155, %182 : vector<1x128xf32>
    %c7 = arith.constant 7 : index
    %c0_55 = arith.constant 0 : index
    %184 = vector.load %arg1[%c7, %c0_55] : memref<9x128xi32, #tpu.memory_space<vmem>>, vector<1x128xi32>
    %185 = vector.broadcast %184 : vector<1x128xi32> to vector<128x128xi32>
    %186 = arith.cmpi eq, %2, %185 : vector<128x128xi32>
    %187 = arith.extui %186 : vector<128x128xi1> to vector<128x128xi32>
    %188 = arith.sitofp %187 : vector<128x128xi32> to vector<128x128xf32>
    %cst_56 = arith.constant dense<0.000000e+00> : vector<32x128xf32>
    %189 = tpu.matmul %0, %188, %cst_56 {dimension_numbers = #tpu.dot_dimension_numbers<[1], [0], [0], [1], [0, 0, 1, 1], [], []>} : vector<32x128xf32>, vector<128x128xf32>, vector<32x128xf32> -> vector<32x128xf32>
    %cst_57 = arith.constant dense<0.000000e+00> : vector<32x128xf32>
    %190 = tpu.matmul %1, %188, %cst_57 {dimension_numbers = #tpu.dot_dimension_numbers<[1], [0], [0], [1], [0, 0, 1, 1], [], []>} : vector<32x128xf32>, vector<128x128xf32>, vector<32x128xf32> -> vector<32x128xf32>
    %191 = arith.addf %189, %190 : vector<32x128xf32>
    %192 = arith.mulf %15, %191 : vector<32x128xf32>
    %cst_58 = arith.constant dense<0.000000e+00> : vector<128xf32>
    %193 = vector.multi_reduction <add>, %192, %cst_58 [0] : vector<32x128xf32> to vector<128xf32>
    %194 = vector.shape_cast %193 : vector<128xf32> to vector<1x128xf32>
    %195 = vector.extract_strided_slice %191 {offsets = [0, 0], sizes = [1, 128], strides = [1, 1]} : vector<32x128xf32> to vector<1x128xf32>
    %196 = arith.mulf %16, %195 : vector<1x128xf32>
    %197 = arith.subf %196, %194 : vector<1x128xf32>
    %cst_59 = arith.constant 1.000000e+00 : f32
    %198 = vector.broadcast %cst_59 : f32 to vector<1x128xf32>
    %199 = arith.cmpf ole, %197, %198 : vector<1x128xf32>
    %cst_60 = arith.constant 1.00000095 : f32
    %200 = vector.broadcast %cst_60 : f32 to vector<1x128xf32>
    %201 = arith.select %199, %200, %197 : vector<1x128xi1>, vector<1x128xf32>
    %202 = arith.mulf %201, %201 : vector<1x128xf32>
    %cst_61 = arith.constant 1.000000e+00 : f32
    %203 = vector.broadcast %cst_61 : f32 to vector<1x128xf32>
    %204 = arith.subf %202, %203 : vector<1x128xf32>
    %205 = math.sqrt %204 : vector<1x128xf32>
    %206 = arith.addf %201, %205 : vector<1x128xf32>
    %207 = math.log %206 : vector<1x128xf32>
    %cst_62 = arith.constant 0.000000e+00 : f32
    %208 = vector.broadcast %cst_62 : f32 to vector<1x128xf32>
    %209 = arith.subf %208, %207 : vector<1x128xf32>
    %210 = math.exp %209 : vector<1x128xf32>
    %211 = arith.addf %183, %210 : vector<1x128xf32>
    %c8 = arith.constant 8 : index
    %c0_63 = arith.constant 0 : index
    %212 = vector.load %arg1[%c8, %c0_63] : memref<9x128xi32, #tpu.memory_space<vmem>>, vector<1x128xi32>
    %213 = vector.broadcast %212 : vector<1x128xi32> to vector<128x128xi32>
    %214 = arith.cmpi eq, %2, %213 : vector<128x128xi32>
    %215 = arith.extui %214 : vector<128x128xi1> to vector<128x128xi32>
    %216 = arith.sitofp %215 : vector<128x128xi32> to vector<128x128xf32>
    %cst_64 = arith.constant dense<0.000000e+00> : vector<32x128xf32>
    %217 = tpu.matmul %0, %216, %cst_64 {dimension_numbers = #tpu.dot_dimension_numbers<[1], [0], [0], [1], [0, 0, 1, 1], [], []>} : vector<32x128xf32>, vector<128x128xf32>, vector<32x128xf32> -> vector<32x128xf32>
    %cst_65 = arith.constant dense<0.000000e+00> : vector<32x128xf32>
    %218 = tpu.matmul %1, %216, %cst_65 {dimension_numbers = #tpu.dot_dimension_numbers<[1], [0], [0], [1], [0, 0, 1, 1], [], []>} : vector<32x128xf32>, vector<128x128xf32>, vector<32x128xf32> -> vector<32x128xf32>
    %219 = arith.addf %217, %218 : vector<32x128xf32>
    %220 = arith.mulf %15, %219 : vector<32x128xf32>
    %cst_66 = arith.constant dense<0.000000e+00> : vector<128xf32>
    %221 = vector.multi_reduction <add>, %220, %cst_66 [0] : vector<32x128xf32> to vector<128xf32>
    %222 = vector.shape_cast %221 : vector<128xf32> to vector<1x128xf32>
    %223 = vector.extract_strided_slice %219 {offsets = [0, 0], sizes = [1, 128], strides = [1, 1]} : vector<32x128xf32> to vector<1x128xf32>
    %224 = arith.mulf %16, %223 : vector<1x128xf32>
    %225 = arith.subf %224, %222 : vector<1x128xf32>
    %cst_67 = arith.constant 1.000000e+00 : f32
    %226 = vector.broadcast %cst_67 : f32 to vector<1x128xf32>
    %227 = arith.cmpf ole, %225, %226 : vector<1x128xf32>
    %cst_68 = arith.constant 1.00000095 : f32
    %228 = vector.broadcast %cst_68 : f32 to vector<1x128xf32>
    %229 = arith.select %227, %228, %225 : vector<1x128xi1>, vector<1x128xf32>
    %230 = arith.mulf %229, %229 : vector<1x128xf32>
    %cst_69 = arith.constant 1.000000e+00 : f32
    %231 = vector.broadcast %cst_69 : f32 to vector<1x128xf32>
    %232 = arith.subf %230, %231 : vector<1x128xf32>
    %233 = math.sqrt %232 : vector<1x128xf32>
    %234 = arith.addf %229, %233 : vector<1x128xf32>
    %235 = math.log %234 : vector<1x128xf32>
    %cst_70 = arith.constant 0.000000e+00 : f32
    %236 = vector.broadcast %cst_70 : f32 to vector<1x128xf32>
    %237 = arith.subf %236, %235 : vector<1x128xf32>
    %238 = math.exp %237 : vector<1x128xf32>
    %239 = arith.addf %211, %238 : vector<1x128xf32>
    %cst_71 = arith.constant 9.99999997E-7 : f32
    %240 = vector.broadcast %cst_71 : f32 to vector<1x128xf32>
    %241 = arith.addf %239, %240 : vector<1x128xf32>
    %242 = math.log %241 : vector<1x128xf32>
    %243 = arith.subf %42, %242 : vector<1x128xf32>
    %cst_72 = arith.constant 0.000000e+00 : f32
    %244 = vector.broadcast %cst_72 : f32 to vector<1x128xf32>
    %245 = arith.subf %244, %243 : vector<1x128xf32>
    %c0_73 = arith.constant 0 : index
    %c0_74 = arith.constant 0 : index
    %246 = vector.load %arg4[%c0_73, %c0_74] : memref<1x128xf32, #tpu.memory_space<vmem>>, vector<1x128xf32>
    tpu.vector_store %arg4[%c0_73, %c0_74], %245 {strides = array<i32>} : memref<1x128xf32, #tpu.memory_space<vmem>>, vector<1x128xf32>,
    return
  }
  func.func @transform_0(%arg0: i32) -> (i32, i32) {
    %c0_i32 = arith.constant 0 : i32
    %c0_i32_0 = arith.constant 0 : i32
    return %c0_i32, %arg0 : i32, i32
  }
  func.func @transform_1(%arg0: i32) -> (i32, i32) {
    %c0_i32 = arith.constant 0 : i32
    %c0_i32_0 = arith.constant 0 : i32
    %c0_i32_1 = arith.constant 0 : i32
    return %c0_i32, %c0_i32_0 : i32, i32
  }
  func.func @transform_2(%arg0: i32) -> (i32, i32) {
    %c0_i32 = arith.constant 0 : i32
    %c0_i32_0 = arith.constant 0 : i32
    %c0_i32_1 = arith.constant 0 : i32
    return %c0_i32, %c0_i32_0 : i32, i32
  }
  func.func @transform_3(%arg0: i32) -> (i32, i32) {
    %c0_i32 = arith.constant 0 : i32
    %c0_i32_0 = arith.constant 0 : i32
    return %c0_i32, %arg0 : i32, i32
  }
}

</mosaic_0001>

<llo_original>
// kernel: lorentz_forward.1
$region0: #{lorentz_forward.1}
  #allocation0 [shape = 'u32[]', space=smem, size = 0x4, offset = 0x4, fixed_abs, tag = 'smem constant byte address 0x4 - core index']
  #allocation1 [shape = 'u32[144,128]{1,0:T(1,128)}', space=vmem, size = 0x12000, scoped, tag = 'internal scratch']
  %s0 = inlined_call_operand.vmem [shape: s32[9,128], index: 0, kind: input, shape index: {}]
  %s1 = inlined_call_operand.vmem [shape: f32[32,128], index: 1, kind: input, shape index: {}]
  %s2 = inlined_call_operand.vmem [shape: f32[32,128], index: 2, kind: input, shape index: {}]
  %s3 = inlined_call_operand.vmem [shape: f32[1,128], index: 3, kind: output, shape index: {}]
  %s4 = sld [smem:[#allocation0]]
  $region22: #{lorentz_forward.1} parent=0
    _
  %s6 = ssub.s32 1, %s4
  %s7 = scalar_select 0, %s6, %s4
  // Predicated region
  $region2: #{lorentz_forward.1} parent=0 // pred_check
    _
  $region3: #{lorentz_forward.1} parent=0 // pred_check_branch
    %9 = sbr.rel (0) target = $region5
  $region4: #{lorentz_forward.1} parent=0 // pred_region
    _
  $region5: #{lorentz_forward.1} parent=0 // pred_fallthru
    _
  // Predicated region
  $region6: #{lorentz_forward.1} parent=0 // pred_check
    _
  $region7: #{lorentz_forward.1} parent=0 // pred_check_branch
    %11 = sbr.rel (0) target = $region9
  $region8: #{lorentz_forward.1} parent=0 // pred_region
    _
  $region9: #{lorentz_forward.1} parent=0 // pred_fallthru
    _
  // Predicated region
  $region10: #{lorentz_forward.1} parent=0 // pred_check
    _
  $region11: #{lorentz_forward.1} parent=0 // pred_check_branch
    %13 = sbr.rel (0) target = $region13
  $region12: #{lorentz_forward.1} parent=0 // pred_region
    _
  $region13: #{lorentz_forward.1} parent=0 // pred_fallthru
    _
  %v14 = vld [vmem:[%s1] sm:$0xff]
  %v15 = vld [vmem:[%s1 + $0x8] sm:$0xff]
  %v16 = vld [vmem:[%s1 + $0x10] sm:$0xff]
  %v17 = vld [vmem:[%s1 + $0x18] sm:$0xff]
  %v18 = vld [vmem:[%s2] sm:$0xff]
  %v19 = vld [vmem:[%s2 + $0x8] sm:$0xff]
  %v20 = vld [vmem:[%s2 + $0x10] sm:$0xff]
  %v21 = vld [vmem:[%s2 + $0x18] sm:$0xff]
  %v22 = vlaneseq
  %v23 = vshrl.u32 %v22, 7
  %v24 = vadd.s32 %v23, 8
  %v25 = vadd.s32 %v23, 16
  %v26 = vadd.s32 %v23, 24
  %v27 = vadd.s32 %v23, 32
  %v28 = vadd.s32 %v23, 40
  %v29 = vadd.s32 %v23, 48
  %v30 = vadd.s32 %v23, 56
  %v31 = vadd.s32 %v23, 64
  %v32 = vadd.s32 %v23, 72
  %v33 = vadd.s32 %v23, 80
  %v34 = vadd.s32 %v23, 88
  %v35 = vadd.s32 %v23, 96
  %v36 = vadd.s32 %v23, 104
  %v37 = vadd.s32 %v23, 112
  %v38 = vadd.s32 %v23, 120
  %v39 = vld [vmem:[%s0] sm:$0x1]
  %v40 = vlaneseq
  %v41 = vshrl.u32 %v40, 7
  %v42 = vsub.s32 0, %v41
  %v43 = vrot.slane %v39, %v42
  %vm44 = vcmp.eq.s32.totalorder %v23, %v43
  %vm45 = vcmp.eq.s32.totalorder %v24, %v43
  %vm46 = vcmp.eq.s32.totalorder %v25, %v43
  %vm47 = vcmp.eq.s32.totalorder %v26, %v43
  %vm48 = vcmp.eq.s32.totalorder %v27, %v43
  %vm49 = vcmp.eq.s32.totalorder %v28, %v43
  %vm50 = vcmp.eq.s32.totalorder %v29, %v43
  %vm51 = vcmp.eq.s32.totalorder %v30, %v43
  %vm52 = vcmp.eq.s32.totalorder %v31, %v43
  %vm53 = vcmp.eq.s32.totalorder %v32, %v43
  %vm54 = vcmp.eq.s32.totalorder %v33, %v43
  %vm55 = vcmp.eq.s32.totalorder %v34, %v43
  %vm56 = vcmp.eq.s32.totalorder %v35, %v43
  %vm57 = vcmp.eq.s32.totalorder %v36, %v43
  %vm58 = vcmp.eq.s32.totalorder %v37, %v43
  %vm59 = vcmp.eq.s32.totalorder %v38, %v43
  %v60 = vsel %vm44, 1, 0
  %v61 = vsel %vm45, 1, 0
  %v62 = vsel %vm46, 1, 0
  %v63 = vsel %vm47, 1, 0
  %v64 = vsel %vm48, 1, 0
  %v65 = vsel %vm49, 1, 0
  %v66 = vsel %vm50, 1, 0
  %v67 = vsel %vm51, 1, 0
  %v68 = vsel %vm52, 1, 0
  %v69 = vsel %vm53, 1, 0
  %v70 = vsel %vm54, 1, 0
  %v71 = vsel %vm55, 1, 0
  %v72 = vsel %vm56, 1, 0
  %v73 = vsel %vm57, 1, 0
  %v74 = vsel %vm58, 1, 0
  %v75 = vsel %vm59, 1, 0
  %v76 = vcvt.s32.f32 %v60
  %v77 = vcvt.s32.f32 %v61
  %v78 = vcvt.s32.f32 %v62
  %v79 = vcvt.s32.f32 %v63
  %v80 = vcvt.s32.f32 %v64
  %v81 = vcvt.s32.f32 %v65
  %v82 = vcvt.s32.f32 %v66
  %v83 = vcvt.s32.f32 %v67
  %v84 = vcvt.s32.f32 %v68
  %v85 = vcvt.s32.f32 %v69
  %v86 = vcvt.s32.f32 %v70
  %v87 = vcvt.s32.f32 %v71
  %v88 = vcvt.s32.f32 %v72
  %v89 = vcvt.s32.f32 %v73
  %v90 = vcvt.s32.f32 %v74
  %v91 = vcvt.s32.f32 %v75
  %92 = vmatprep.subr.mxu0 0.0
  %93 = vmatpush1.msra.mxu0 %v76
  %94 = vmatprep.subr.mxu0 0.0
  %95 = vmatpush1.msra.mxu0 %v77
  %96 = vmatprep.subr.mxu0 0.0
  %97 = vmatpush1.msra.mxu0 %v78
  %98 = vmatprep.subr.mxu0 0.0
  %99 = vmatpush1.msra.mxu0 %v79
  %100 = vmatprep.subr.mxu0 0.0
  %101 = vmatpush1.msra.mxu0 %v80
  %102 = vmatprep.subr.mxu0 0.0
  %103 = vmatpush1.msra.mxu0 %v81
  %104 = vmatprep.subr.mxu0 0.0
  %105 = vmatpush1.msra.mxu0 %v82
  %106 = vmatprep.subr.mxu0 0.0
  %107 = vmatpush1.msra.mxu0 %v83
  %108 = vmatprep.subr.mxu0 0.0
  %109 = vmatpush1.msra.mxu0 %v84
  %110 = vmatprep.subr.mxu0 0.0
  %111 = vmatpush1.msra.mxu0 %v85
  %112 = vmatprep.subr.mxu0 0.0
  %113 = vmatpush1.msra.mxu0 %v86
  %114 = vmatprep.subr.mxu0 0.0
  %115 = vmatpush1.msra.mxu0 %v87
  %116 = vmatprep.subr.mxu0 0.0
  %117 = vmatpush1.msra.mxu0 %v88
  %118 = vmatprep.subr.mxu0 0.0
  %119 = vmatpush1.msra.mxu0 %v89
  %120 = vmatprep.subr.mxu0 0.0
  %121 = vmatpush1.msra.mxu0 %v90
  %122 = vmatprep.subr.mxu0 0.0
  %123 = vmatpush1.msra.mxu0 %v91
  %124 = vmatprep.subr.mxu0 0.0
  %125 = vmatpush1.msra.mxu0 0.0
  %126 = vmatprep.subr.mxu0 0.0
  %127 = vmatpush1.msra.mxu0 0.0
  %128 = vmatprep.subr.mxu0 0.0
  %129 = vmatpush1.msra.mxu0 0.0
  %130 = vmatprep.subr.mxu0 0.0
  %131 = vmatpush1.msra.mxu0 0.0
  %132 = vmatprep.subr.mxu0 0.0
  %133 = vmatpush1.msra.mxu0 0.0
  %134 = vmatprep.subr.mxu0 0.0
  %135 = vmatpush1.msra.mxu0 0.0
  %136 = vmatprep.subr.mxu0 0.0
  %137 = vmatpush1.msra.mxu0 0.0
  %138 = vmatprep.subr.mxu0 0.0
  %139 = vmatpush1.msra.mxu0 0.0
  %140 = vmatprep.subr.mxu0 0.0
  %141 = vmatpush1.msra.mxu0 0.0
  %142 = vmatprep.subr.mxu0 0.0
  %143 = vmatpush1.msra.mxu0 0.0
  %144 = vmatprep.subr.mxu0 0.0
  %145 = vmatpush1.msra.mxu0 0.0
  %146 = vmatprep.subr.mxu0 0.0
  %147 = vmatpush1.msra.mxu0 0.0
  %148 = vmatprep.subr.mxu0 0.0
  %149 = vmatpush1.msra.mxu0 0.0
  %150 = vmatprep.subr.mxu0 0.0
  %151 = vmatpush1.msra.mxu0 0.0
  %152 = vmatprep.subr.mxu0 0.0
  %153 = vmatpush1.msra.mxu0 0.0
  %154 = vmatprep.subr.mxu0 0.0
  %155 = vmatpush1.msra.mxu0 0.0
  %156 = vmatprep.mubr.f32.mxu0 0.0
  %157 = vmatmul.mubr.f32.gmra.mrb[0].mxu0 %v18
  %v158 = vpop.f32.mrb[0].mxu0
  %v159 = vadd.f32 0.0, %v158
  %v160 = vpop.f32.mrb[0].mxu0
  %161 = vmatprep.mubr.f32.mxu0 0.0
  %162 = vmatmul.mubr.f32.gmra.mrb[0].mxu0 %v19
  %v163 = vpop.f32.mrb[0].mxu0
  %v164 = vadd.f32 0.0, %v163
  %v165 = vpop.f32.mrb[0].mxu0
  %166 = vmatprep.mubr.f32.mxu0 0.0
  %167 = vmatmul.mubr.f32.gmra.mrb[0].mxu0 %v20
  %v168 = vpop.f32.mrb[0].mxu0
  %v169 = vadd.f32 0.0, %v168
  %v170 = vpop.f32.mrb[0].mxu0
  %171 = vmatprep.mubr.f32.mxu0 0.0
  %172 = vmatmul.mubr.f32.gmra.mrb[0].mxu0 %v21
  %v173 = vpop.f32.mrb[0].mxu0
  %v174 = vadd.f32 0.0, %v173
  %v175 = vpop.f32.mrb[0].mxu0
  %176 = vdwg.mxu0
  %177 = vmatprep.subr.mxu0 0.0
  %178 = vmatpush1.msra.mxu0 %v76
  %179 = vmatprep.subr.mxu0 0.0
  %180 = vmatpush1.msra.mxu0 %v77
  %181 = vmatprep.subr.mxu0 0.0
  %182 = vmatpush1.msra.mxu0 %v78
  %183 = vmatprep.subr.mxu0 0.0
  %184 = vmatpush1.msra.mxu0 %v79
  %185 = vmatprep.subr.mxu0 0.0
  %186 = vmatpush1.msra.mxu0 %v80
  %187 = vmatprep.subr.mxu0 0.0
  %188 = vmatpush1.msra.mxu0 %v81
  %189 = vmatprep.subr.mxu0 0.0
  %190 = vmatpush1.msra.mxu0 %v82
  %191 = vmatprep.subr.mxu0 0.0
  %192 = vmatpush1.msra.mxu0 %v83
  %193 = vmatprep.subr.mxu0 0.0
  %194 = vmatpush1.msra.mxu0 %v84
  %195 = vmatprep.subr.mxu0 0.0
  %196 = vmatpush1.msra.mxu0 %v85
  %197 = vmatprep.subr.mxu0 0.0
  %198 = vmatpush1.msra.mxu0 %v86
  %199 = vmatprep.subr.mxu0 0.0
  %200 = vmatpush1.msra.mxu0 %v87
  %201 = vmatprep.subr.mxu0 0.0
  %202 = vmatpush1.msra.mxu0 %v88
  %203 = vmatprep.subr.mxu0 0.0
  %204 = vmatpush1.msra.mxu0 %v89
  %205 = vmatprep.subr.mxu0 0.0
  %206 = vmatpush1.msra.mxu0 %v90
  %207 = vmatprep.subr.mxu0 0.0
  %208 = vmatpush1.msra.mxu0 %v91
  %209 = vmatprep.subr.mxu0 0.0
  %210 = vmatpush1.msra.mxu0 0.0
  %211 = vmatprep.subr.mxu0 0.0
  %212 = vmatpush1.msra.mxu0 0.0
  %213 = vmatprep.subr.mxu0 0.0
  %214 = vmatpush1.msra.mxu0 0.0
  %215 = vmatprep.subr.mxu0 0.0
  %216 = vmatpush1.msra.mxu0 0.0
  %217 = vmatprep.subr.mxu0 0.0
  %218 = vmatpush1.msra.mxu0 0.0
  %219 = vmatprep.subr.mxu0 0.0
  %220 = vmatpush1.msra.mxu0 0.0
  %221 = vmatprep.subr.mxu0 0.0
  %222 = vmatpush1.msra.mxu0 0.0
  %223 = vmatprep.subr.mxu0 0.0
  %224 = vmatpush1.msra.mxu0 0.0
  %225 = vmatprep.subr.mxu0 0.0
  %226 = vmatpush1.msra.mxu0 0.0
  %227 = vmatprep.subr.mxu0 0.0
  %228 = vmatpush1.msra.mxu0 0.0
  %229 = vmatprep.subr.mxu0 0.0
  %230 = vmatpush1.msra.mxu0 0.0
  %231 = vmatprep.subr.mxu0 0.0
  %232 = vmatpush1.msra.mxu0 0.0
  %233 = vmatprep.subr.mxu0 0.0
  %234 = vmatpush1.msra.mxu0 0.0
  %235 = vmatprep.subr.mxu0 0.0
  %236 = vmatpush1.msra.mxu0 0.0
  %237 = vmatprep.subr.mxu0 0.0
  %238 = vmatpush1.msra.mxu0 0.0
  %239 = vmatprep.subr.mxu0 0.0
  %240 = vmatpush1.msra.mxu0 0.0
  %241 = vmatprep.mubr.f32.mxu0 0.0
  %242 = vmatmul.mubr.f32.gmra.mrb[0].mxu0 %v14
  %v243 = vpop.f32.mrb[0].mxu0
  %v244 = vadd.f32 %v159, %v243
  %v245 = vpop.f32.mrb[0].mxu0
  %246 = vmatprep.mubr.f32.mxu0 0.0
  %247 = vmatmul.mubr.f32.gmra.mrb[0].mxu0 %v15
  %v248 = vpop.f32.mrb[0].mxu0
  %v249 = vadd.f32 %v164, %v248
  %v250 = vpop.f32.mrb[0].mxu0
  %251 = vmatprep.mubr.f32.mxu0 0.0
  %252 = vmatmul.mubr.f32.gmra.mrb[0].mxu0 %v16
  %v253 = vpop.f32.mrb[0].mxu0
  %v254 = vadd.f32 %v169, %v253
  %v255 = vpop.f32.mrb[0].mxu0
  %256 = vmatprep.mubr.f32.mxu0 0.0
  %257 = vmatmul.mubr.f32.gmra.mrb[0].mxu0 %v17
  %v258 = vpop.f32.mrb[0].mxu0
  %v259 = vadd.f32 %v174, %v258
  %v260 = vpop.f32.mrb[0].mxu0
  %261 = vdwg.mxu0
  %vm262 = vcmp.eq.s32.totalorder %v23, 0
  %vm263 = vcmp.eq.s32.totalorder %v24, 0
  %vm264 = vcmp.eq.s32.totalorder %v25, 0
  %vm265 = vcmp.eq.s32.totalorder %v26, 0
  %v266 = vsel %vm262, 0.0, %v244
  %v267 = vsel %vm263, 0.0, %v249
  %v268 = vsel %vm264, 0.0, %v254
  %v269 = vsel %vm265, 0.0, %v259
  %v270 = vld [vmem:[%s0 + $0x1] sm:$0x1]
  %v271 = vlaneseq
  %v272 = vshrl.u32 %v271, 7
  %v273 = vsub.s32 0, %v272
  %v274 = vrot.slane %v270, %v273
  %vm275 = vcmp.eq.s32.totalorder %v23, %v274
  %vm276 = vcmp.eq.s32.totalorder %v24, %v274
  %vm277 = vcmp.eq.s32.totalorder %v25, %v274
  %vm278 = vcmp.eq.s32.totalorder %v26, %v274
  %vm279 = vcmp.eq.s32.totalorder %v27, %v274
  %vm280 = vcmp.eq.s32.totalorder %v28, %v274
  %vm281 = vcmp.eq.s32.totalorder %v29, %v274
  %vm282 = vcmp.eq.s32.totalorder %v30, %v274
  %vm283 = vcmp.eq.s32.totalorder %v31, %v274
  %vm284 = vcmp.eq.s32.totalorder %v32, %v274
  %vm285 = vcmp.eq.s32.totalorder %v33, %v274
  %vm286 = vcmp.eq.s32.totalorder %v34, %v274
  %vm287 = vcmp.eq.s32.totalorder %v35, %v274
  %vm288 = vcmp.eq.s32.totalorder %v36, %v274
  %vm289 = vcmp.eq.s32.totalorder %v37, %v274
  %vm290 = vcmp.eq.s32.totalorder %v38, %v274
  %v291 = vsel %vm275, 1, 0
  %v292 = vsel %vm276, 1, 0
  %v293 = vsel %vm277, 1, 0
  %v294 = vsel %vm278, 1, 0
  %v295 = vsel %vm279, 1, 0
  %v296 = vsel %vm280, 1, 0
  %v297 = vsel %vm281, 1, 0
  %v298 = vsel %vm282, 1, 0
  %v299 = vsel %vm283, 1, 0
  %v300 = vsel %vm284, 1, 0
  %v301 = vsel %vm285, 1, 0
  %v302 = vsel %vm286, 1, 0
  %v303 = vsel %vm287, 1, 0
  %v304 = vsel %vm288, 1, 0
  %v305 = vsel %vm289, 1, 0
  %v306 = vsel %vm290, 1, 0
  %v307 = vcvt.s32.f32 %v291
  %v308 = vcvt.s32.f32 %v292
  %v309 = vcvt.s32.f32 %v293
  %v310 = vcvt.s32.f32 %v294
  %v311 = vcvt.s32.f32 %v295
  %v312 = vcvt.s32.f32 %v296
  %v313 = vcvt.s32.f32 %v297
  %v314 = vcvt.s32.f32 %v298
  %v315 = vcvt.s32.f32 %v299
  %v316 = vcvt.s32.f32 %v300
  %v317 = vcvt.s32.f32 %v301
  %v318 = vcvt.s32.f32 %v302
  %v319 = vcvt.s32.f32 %v303
  %v320 = vcvt.s32.f32 %v304
  %v321 = vcvt.s32.f32 %v305
  %v322 = vcvt.s32.f32 %v306
  %323 = vmatprep.subr.mxu0 0.0
  %324 = vmatpush1.msra.mxu0 %v307
  %325 = vmatprep.subr.mxu0 0.0
  %326 = vmatpush1.msra.mxu0 %v308
  %327 = vmatprep.subr.mxu0 0.0
  %328 = vmatpush1.msra.mxu0 %v309
  %329 = vmatprep.subr.mxu0 0.0
  %330 = vmatpush1.msra.mxu0 %v310
  %331 = vmatprep.subr.mxu0 0.0
  %332 = vmatpush1.msra.mxu0 %v311
  %333 = vmatprep.subr.mxu0 0.0
  %334 = vmatpush1.msra.mxu0 %v312
  %335 = vmatprep.subr.mxu0 0.0
  %336 = vmatpush1.msra.mxu0 %v313
  %337 = vmatprep.subr.mxu0 0.0
  %338 = vmatpush1.msra.mxu0 %v314
  %339 = vmatprep.subr.mxu0 0.0
  %340 = vmatpush1.msra.mxu0 %v315
  %341 = vmatprep.subr.mxu0 0.0
  %342 = vmatpush1.msra.mxu0 %v316
  %343 = vmatprep.subr.mxu0 0.0
  %344 = vmatpush1.msra.mxu0 %v317
  %345 = vmatprep.subr.mxu0 0.0
  %346 = vmatpush1.msra.mxu0 %v318
  %347 = vmatprep.subr.mxu0 0.0
  %348 = vmatpush1.msra.mxu0 %v319
  %349 = vmatprep.subr.mxu0 0.0
  %350 = vmatpush1.msra.mxu0 %v320
  %351 = vmatprep.subr.mxu0 0.0
  %352 = vmatpush1.msra.mxu0 %v321
  %353 = vmatprep.subr.mxu0 0.0
  %354 = vmatpush1.msra.mxu0 %v322
  %355 = vmatprep.subr.mxu0 0.0
  %356 = vmatpush1.msra.mxu0 0.0
  %357 = vmatprep.subr.mxu0 0.0
  %358 = vmatpush1.msra.mxu0 0.0
  %359 = vmatprep.subr.mxu0 0.0
  %360 = vmatpush1.msra.mxu0 0.0
  %361 = vmatprep.subr.mxu0 0.0
  %362 = vmatpush1.msra.mxu0 0.0
  %363 = vmatprep.subr.mxu0 0.0
  %364 = vmatpush1.msra.mxu0 0.0
  %365 = vmatprep.subr.mxu0 0.0
  %366 = vmatpush1.msra.mxu0 0.0
  %367 = vmatprep.subr.mxu0 0.0
  %368 = vmatpush1.msra.mxu0 0.0
  %369 = vmatprep.subr.mxu0 0.0
  %370 = vmatpush1.msra.mxu0 0.0
  %371 = vmatprep.subr.mxu0 0.0
  %372 = vmatpush1.msra.mxu0 0.0
  %373 = vmatprep.subr.mxu0 0.0
  %374 = vmatpush1.msra.mxu0 0.0
  %375 = vmatprep.subr.mxu0 0.0
  %376 = vmatpush1.msra.mxu0 0.0
  %377 = vmatprep.subr.mxu0 0.0
  %378 = vmatpush1.msra.mxu0 0.0
  %379 = vmatprep.subr.mxu0 0.0
  %380 = vmatpush1.msra.mxu0 0.0
  %381 = vmatprep.subr.mxu0 0.0
  %382 = vmatpush1.msra.mxu0 0.0
  %383 = vmatprep.subr.mxu0 0.0
  %384 = vmatpush1.msra.mxu0 0.0
  %385 = vmatprep.subr.mxu0 0.0
  %386 = vmatpush1.msra.mxu0 0.0
  %387 = vmatprep.mubr.f32.mxu0 0.0
  %388 = vmatmul.mubr.f32.gmra.mrb[0].mxu0 %v18
  %v389 = vpop.f32.mrb[0].mxu0
  %v390 = vadd.f32 0.0, %v389
  %v391 = vpop.f32.mrb[0].mxu0
  %392 = vmatprep.mubr.f32.mxu0 0.0
  %393 = vmatmul.mubr.f32.gmra.mrb[0].mxu0 %v19
  %v394 = vpop.f32.mrb[0].mxu0
  %v395 = vadd.f32 0.0, %v394
  %v396 = vpop.f32.mrb[0].mxu0
  %397 = vmatprep.mubr.f32.mxu0 0.0
  %398 = vmatmul.mubr.f32.gmra.mrb[0].mxu0 %v20
  %v399 = vpop.f32.mrb[0].mxu0
  %v400 = vadd.f32 0.0, %v399
  %v401 = vpop.f32.mrb[0].mxu0
  %402 = vmatprep.mubr.f32.mxu0 0.0
  %403 = vmatmul.mubr.f32.gmra.mrb[0].mxu0 %v21
  %v404 = vpop.f32.mrb[0].mxu0
  %v405 = vadd.f32 0.0, %v404
  %v406 = vpop.f32.mrb[0].mxu0
  %407 = vdwg.mxu0
  %408 = vmatprep.subr.mxu0 0.0
  %409 = vmatpush1.msra.mxu0 %v307
  %410 = vmatprep.subr.mxu0 0.0
  %411 = vmatpush1.msra.mxu0 %v308
  %412 = vmatprep.subr.mxu0 0.0
  %413 = vmatpush1.msra.mxu0 %v309
  %414 = vmatprep.subr.mxu0 0.0
  %415 = vmatpush1.msra.mxu0 %v310
  %416 = vmatprep.subr.mxu0 0.0
  %417 = vmatpush1.msra.mxu0 %v311
  %418 = vmatprep.subr.mxu0 0.0
  %419 = vmatpush1.msra.mxu0 %v312
  %420 = vmatprep.subr.mxu0 0.0
  %421 = vmatpush1.msra.mxu0 %v313
  %422 = vmatprep.subr.mxu0 0.0
  %423 = vmatpush1.msra.mxu0 %v314
  %424 = vmatprep.subr.mxu0 0.0
  %425 = vmatpush1.msra.mxu0 %v315
  %426 = vmatprep.subr.mxu0 0.0
  %427 = vmatpush1.msra.mxu0 %v316
  %428 = vmatprep.subr.mxu0 0.0
  %429 = vmatpush1.msra.mxu0 %v317
  %430 = vmatprep.subr.mxu0 0.0
  %431 = vmatpush1.msra.mxu0 %v318
  %432 = vmatprep.subr.mxu0 0.0
  %433 = vmatpush1.msra.mxu0 %v319
  %434 = vmatprep.subr.mxu0 0.0
  %435 = vmatpush1.msra.mxu0 %v320
  %436 = vmatprep.subr.mxu0 0.0
  %437 = vmatpush1.msra.mxu0 %v321
  %438 = vmatprep.subr.mxu0 0.0
  %439 = vmatpush1.msra.mxu0 %v322
  %440 = vmatprep.subr.mxu0 0.0
  %441 = vmatpush1.msra.mxu0 0.0
  %442 = vmatprep.subr.mxu0 0.0
  %443 = vmatpush1.msra.mxu0 0.0
  %444 = vmatprep.subr.mxu0 0.0
  %445 = vmatpush1.msra.mxu0 0.0
  %446 = vmatprep.subr.mxu0 0.0
  %447 = vmatpush1.msra.mxu0 0.0
  %448 = vmatprep.subr.mxu0 0.0
  %449 = vmatpush1.msra.mxu0 0.0
  %450 = vmatprep.subr.mxu0 0.0
  %451 = vmatpush1.msra.mxu0 0.0
  %452 = vmatprep.subr.mxu0 0.0
  %453 = vmatpush1.msra.mxu0 0.0
  %454 = vmatprep.subr.mxu0 0.0
  %455 = vmatpush1.msra.mxu0 0.0
  %456 = vmatprep.subr.mxu0 0.0
  %457 = vmatpush1.msra.mxu0 0.0
  %458 = vmatprep.subr.mxu0 0.0
  %459 = vmatpush1.msra.mxu0 0.0
  %460 = vmatprep.subr.mxu0 0.0
  %461 = vmatpush1.msra.mxu0 0.0
  %462 = vmatprep.subr.mxu0 0.0
  %463 = vmatpush1.msra.mxu0 0.0
  %464 = vmatprep.subr.mxu0 0.0
  %465 = vmatpush1.msra.mxu0 0.0
  %466 = vmatprep.subr.mxu0 0.0
  %467 = vmatpush1.msra.mxu0 0.0
  %468 = vmatprep.subr.mxu0 0.0
  %469 = vmatpush1.msra.mxu0 0.0
  %470 = vmatprep.subr.mxu0 0.0
  %471 = vmatpush1.msra.mxu0 0.0
  %472 = vmatprep.mubr.f32.mxu0 0.0
  %473 = vmatmul.mubr.f32.gmra.mrb[0].mxu0 %v14
  %v474 = vpop.f32.mrb[0].mxu0
  %v475 = vadd.f32 %v390, %v474
  %v476 = vpop.f32.mrb[0].mxu0
  %477 = vmatprep.mubr.f32.mxu0 0.0
  %478 = vmatmul.mubr.f32.gmra.mrb[0].mxu0 %v15
  %v479 = vpop.f32.mrb[0].mxu0
  %v480 = vadd.f32 %v395, %v479
  %v481 = vpop.f32.mrb[0].mxu0
  %482 = vmatprep.mubr.f32.mxu0 0.0
  %483 = vmatmul.mubr.f32.gmra.mrb[0].mxu0 %v16
  %v484 = vpop.f32.mrb[0].mxu0
  %v485 = vadd.f32 %v400, %v484
  %v486 = vpop.f32.mrb[0].mxu0
  %487 = vmatprep.mubr.f32.mxu0 0.0
  %488 = vmatmul.mubr.f32.gmra.mrb[0].mxu0 %v17
  %v489 = vpop.f32.mrb[0].mxu0
  %v490 = vadd.f32 %v405, %v489
  %v491 = vpop.f32.mrb[0].mxu0
  %492 = vdwg.mxu0
  %v493 = vmul.f32 %v266, %v475
  %v494 = vmul.f32 %v267, %v480
  %v495 = vmul.f32 %v268, %v485
  %v496 = vmul.f32 %v269, %v490
  %v497 = vadd.f32 %v493, %v494
  %v498 = vadd.f32 %v497, %v495
  %v499 = vadd.f32 %v498, %v496
  %v500 = vrot.slane %v499, 4
  %v501 = vadd.f32 %v499, %v500
  %v502 = vrot.slane %v501, 2
  %v503 = vadd.f32 %v501, %v502
  %v504 = vrot.slane %v503, 1
  %v505 = vadd.f32 %v503, %v504
  %v506 = vmul.f32 %v244, %v475
  %v507 = vsub.f32 %v506, %v505
  %vm508 = vcmp.le.f32.partialorder %v507, 1.0
  %v509 = vsel %vm508, 1.000001, %v507
  %v510 = vmul.f32 %v509, %v509
  %v511 = vsub.f32 %v510, 1.0
  %v512 = vrsqrt.pop %v511
  %v513 = vmul.f32 %v511, %v512
  %vm514 = vcmp.eq.f32.partialorder %v511, inf
  %v515 = vsel %vm514, %v511, %v513
  %vm516 = vcmp.eq.f32.partialorder %v511, 0.0
  %v517 = vand.u32 %v511, 2147483648
  %v518 = vsel %vm516, %v517, %v515
  %v519 = vadd.f32 %v509, %v518
  %v520 = vlog2.pop %v519
  %v521 = vmul.f32 %v520, 0.6931472
  %v522 = vsub.f32 0.0, %v521
  %v523 = vmul.f32 %v522, 1.442695
  %v524 = vpow.pop %v523
  %v525 = vld [vmem:[%s0 + $0x2] sm:$0x1]
  %v526 = vlaneseq
  %v527 = vshrl.u32 %v526, 7
  %v528 = vsub.s32 0, %v527
  %v529 = vrot.slane %v525, %v528
  %vm530 = vcmp.eq.s32.totalorder %v23, %v529
  %vm531 = vcmp.eq.s32.totalorder %v24, %v529
  %vm532 = vcmp.eq.s32.totalorder %v25, %v529
  %vm533 = vcmp.eq.s32.totalorder %v26, %v529
  %vm534 = vcmp.eq.s32.totalorder %v27, %v529
  %vm535 = vcmp.eq.s32.totalorder %v28, %v529
  %vm536 = vcmp.eq.s32.totalorder %v29, %v529
  %vm537 = vcmp.eq.s32.totalorder %v30, %v529
  %vm538 = vcmp.eq.s32.totalorder %v31, %v529
  %vm539 = vcmp.eq.s32.totalorder %v32, %v529
  %vm540 = vcmp.eq.s32.totalorder %v33, %v529
  %vm541 = vcmp.eq.s32.totalorder %v34, %v529
  %vm542 = vcmp.eq.s32.totalorder %v35, %v529
  %vm543 = vcmp.eq.s32.totalorder %v36, %v529
  %vm544 = vcmp.eq.s32.totalorder %v37, %v529
  %vm545 = vcmp.eq.s32.totalorder %v38, %v529
  %v546 = vsel %vm530, 1, 0
  %v547 = vsel %vm531, 1, 0
  %v548 = vsel %vm532, 1, 0
  %v549 = vsel %vm533, 1, 0
  %v550 = vsel %vm534, 1, 0
  %v551 = vsel %vm535, 1, 0
  %v552 = vsel %vm536, 1, 0
  %v553 = vsel %vm537, 1, 0
  %v554 = vsel %vm538, 1, 0
  %v555 = vsel %vm539, 1, 0
  %v556 = vsel %vm540, 1, 0
  %v557 = vsel %vm541, 1, 0
  %v558 = vsel %vm542, 1, 0
  %v559 = vsel %vm543, 1, 0
  %v560 = vsel %vm544, 1, 0
  %v561 = vsel %vm545, 1, 0
  %v562 = vcvt.s32.f32 %v546
  %v563 = vcvt.s32.f32 %v547
  %v564 = vcvt.s32.f32 %v548
  %v565 = vcvt.s32.f32 %v549
  %v566 = vcvt.s32.f32 %v550
  %v567 = vcvt.s32.f32 %v551
  %v568 = vcvt.s32.f32 %v552
  %v569 = vcvt.s32.f32 %v553
  %v570 = vcvt.s32.f32 %v554
  %v571 = vcvt.s32.f32 %v555
  %v572 = vcvt.s32.f32 %v556
  %v573 = vcvt.s32.f32 %v557
  %v574 = vcvt.s32.f32 %v558
  %v575 = vcvt.s32.f32 %v559
  %v576 = vcvt.s32.f32 %v560
  %v577 = vcvt.s32.f32 %v561
  %578 = vmatprep.subr.mxu0 0.0
  %579 = vmatpush1.msra.mxu0 %v562
  %580 = vmatprep.subr.mxu0 0.0
  %581 = vmatpush1.msra.mxu0 %v563
  %582 = vmatprep.subr.mxu0 0.0
  %583 = vmatpush1.msra.mxu0 %v564
  %584 = vmatprep.subr.mxu0 0.0
  %585 = vmatpush1.msra.mxu0 %v565
  %586 = vmatprep.subr.mxu0 0.0
  %587 = vmatpush1.msra.mxu0 %v566
  %588 = vmatprep.subr.mxu0 0.0
  %589 = vmatpush1.msra.mxu0 %v567
  %590 = vmatprep.subr.mxu0 0.0
  %591 = vmatpush1.msra.mxu0 %v568
  %592 = vmatprep.subr.mxu0 0.0
  %593 = vmatpush1.msra.mxu0 %v569
  %594 = vmatprep.subr.mxu0 0.0
  %595 = vmatpush1.msra.mxu0 %v570
  %596 = vmatprep.subr.mxu0 0.0
  %597 = vmatpush1.msra.mxu0 %v571
  %598 = vmatprep.subr.mxu0 0.0
  %599 = vmatpush1.msra.mxu0 %v572
  %600 = vmatprep.subr.mxu0 0.0
  %601 = vmatpush1.msra.mxu0 %v573
  %602 = vmatprep.subr.mxu0 0.0
  %603 = vmatpush1.msra.mxu0 %v574
  %604 = vmatprep.subr.mxu0 0.0
  %605 = vmatpush1.msra.mxu0 %v575
  %606 = vmatprep.subr.mxu0 0.0
  %607 = vmatpush1.msra.mxu0 %v576
  %608 = vmatprep.subr.mxu0 0.0
  %609 = vmatpush1.msra.mxu0 %v577
  %610 = vmatprep.subr.mxu0 0.0
  %611 = vmatpush1.msra.mxu0 0.0
  %612 = vmatprep.subr.mxu0 0.0
  %613 = vmatpush1.msra.mxu0 0.0
  %614 = vmatprep.subr.mxu0 0.0
  %615 = vmatpush1.msra.mxu0 0.0
  %616 = vmatprep.subr.mxu0 0.0
  %617 = vmatpush1.msra.mxu0 0.0
  %618 = vmatprep.subr.mxu0 0.0
  %619 = vmatpush1.msra.mxu0 0.0
  %620 = vmatprep.subr.mxu0 0.0
  %621 = vmatpush1.msra.mxu0 0.0
  %622 = vmatprep.subr.mxu0 0.0
  %623 = vmatpush1.msra.mxu0 0.0
  %624 = vmatprep.subr.mxu0 0.0
  %625 = vmatpush1.msra.mxu0 0.0
  %626 = vmatprep.subr.mxu0 0.0
  %627 = vmatpush1.msra.mxu0 0.0
  %628 = vmatprep.subr.mxu0 0.0
  %629 = vmatpush1.msra.mxu0 0.0
  %630 = vmatprep.subr.mxu0 0.0
  %631 = vmatpush1.msra.mxu0 0.0
  %632 = vmatprep.subr.mxu0 0.0
  %633 = vmatpush1.msra.mxu0 0.0
  %634 = vmatprep.subr.mxu0 0.0
  %635 = vmatpush1.msra.mxu0 0.0
  %636 = vmatprep.subr.mxu0 0.0
  %637 = vmatpush1.msra.mxu0 0.0
  %638 = vmatprep.subr.mxu0 0.0
  %639 = vmatpush1.msra.mxu0 0.0
  %640 = vmatprep.subr.mxu0 0.0
  %641 = vmatpush1.msra.mxu0 0.0
  %642 = vmatprep.mubr.f32.mxu0 0.0
  %643 = vmatmul.mubr.f32.gmra.mrb[0].mxu0 %v18
  %v644 = vpop.f32.mrb[0].mxu0
  %v645 = vadd.f32 0.0, %v644
  %v646 = vpop.f32.mrb[0].mxu0
  %647 = vmatprep.mubr.f32.mxu0 0.0
  %648 = vmatmul.mubr.f32.gmra.mrb[0].mxu0 %v19
  %v649 = vpop.f32.mrb[0].mxu0
  %v650 = vadd.f32 0.0, %v649
  %v651 = vpop.f32.mrb[0].mxu0
  %652 = vmatprep.mubr.f32.mxu0 0.0
  %653 = vmatmul.mubr.f32.gmra.mrb[0].mxu0 %v20
  %v654 = vpop.f32.mrb[0].mxu0
  %v655 = vadd.f32 0.0, %v654
  %v656 = vpop.f32.mrb[0].mxu0
  %657 = vmatprep.mubr.f32.mxu0 0.0
  %658 = vmatmul.mubr.f32.gmra.mrb[0].mxu0 %v21
  %v659 = vpop.f32.mrb[0].mxu0
  %v660 = vadd.f32 0.0, %v659
  %v661 = vpop.f32.mrb[0].mxu0
  %662 = vdwg.mxu0
  %663 = vmatprep.subr.mxu0 0.0
  %664 = vmatpush1.msra.mxu0 %v562
  %665 = vmatprep.subr.mxu0 0.0
  %666 = vmatpush1.msra.mxu0 %v563
  %667 = vmatprep.subr.mxu0 0.0
  %668 = vmatpush1.msra.mxu0 %v564
  %669 = vmatprep.subr.mxu0 0.0
  %670 = vmatpush1.msra.mxu0 %v565
  %671 = vmatprep.subr.mxu0 0.0
  %672 = vmatpush1.msra.mxu0 %v566
  %673 = vmatprep.subr.mxu0 0.0
  %674 = vmatpush1.msra.mxu0 %v567
  %675 = vmatprep.subr.mxu0 0.0
  %676 = vmatpush1.msra.mxu0 %v568
  %677 = vmatprep.subr.mxu0 0.0
  %678 = vmatpush1.msra.mxu0 %v569
  %679 = vmatprep.subr.mxu0 0.0
  %680 = vmatpush1.msra.mxu0 %v570
  %681 = vmatprep.subr.mxu0 0.0
  %682 = vmatpush1.msra.mxu0 %v571
  %683 = vmatprep.subr.mxu0 0.0
  %684 = vmatpush1.msra.mxu0 %v572
  %685 = vmatprep.subr.mxu0 0.0
  %686 = vmatpush1.msra.mxu0 %v573
  %687 = vmatprep.subr.mxu0 0.0
  %688 = vmatpush1.msra.mxu0 %v574
  %689 = vmatprep.subr.mxu0 0.0
  %690 = vmatpush1.msra.mxu0 %v575
  %691 = vmatprep.subr.mxu0 0.0
  %692 = vmatpush1.msra.mxu0 %v576
  %693 = vmatprep.subr.mxu0 0.0
  %694 = vmatpush1.msra.mxu0 %v577
  %695 = vmatprep.subr.mxu0 0.0
  %696 = vmatpush1.msra.mxu0 0.0
  %697 = vmatprep.subr.mxu0 0.0
  %698 = vmatpush1.msra.mxu0 0.0
  %699 = vmatprep.subr.mxu0 0.0
  %700 = vmatpush1.msra.mxu0 0.0
  %701 = vmatprep.subr.mxu0 0.0
  %702 = vmatpush1.msra.mxu0 0.0
  %703 = vmatprep.subr.mxu0 0.0
  %704 = vmatpush1.msra.mxu0 0.0
  %705 = vmatprep.subr.mxu0 0.0
  %706 = vmatpush1.msra.mxu0 0.0
  %707 = vmatprep.subr.mxu0 0.0
  %708 = vmatpush1.msra.mxu0 0.0
  %709 = vmatprep.subr.mxu0 0.0
  %710 = vmatpush1.msra.mxu0 0.0
  %711 = vmatprep.subr.mxu0 0.0
  %712 = vmatpush1.msra.mxu0 0.0
  %713 = vmatprep.subr.mxu0 0.0
  %714 = vmatpush1.msra.mxu0 0.0
  %715 = vmatprep.subr.mxu0 0.0
  %716 = vmatpush1.msra.mxu0 0.0
  %717 = vmatprep.subr.mxu0 0.0
  %718 = vmatpush1.msra.mxu0 0.0
  %719 = vmatprep.subr.mxu0 0.0
  %720 = vmatpush1.msra.mxu0 0.0
  %721 = vmatprep.subr.mxu0 0.0
  %722 = vmatpush1.msra.mxu0 0.0
  %723 = vmatprep.subr.mxu0 0.0
  %724 = vmatpush1.msra.mxu0 0.0
  %725 = vmatprep.subr.mxu0 0.0
  %726 = vmatpush1.msra.mxu0 0.0
  %727 = vmatprep.mubr.f32.mxu0 0.0
  %728 = vmatmul.mubr.f32.gmra.mrb[0].mxu0 %v14
  %v729 = vpop.f32.mrb[0].mxu0
  %v730 = vadd.f32 %v645, %v729
  %v731 = vpop.f32.mrb[0].mxu0
  %732 = vmatprep.mubr.f32.mxu0 0.0
  %733 = vmatmul.mubr.f32.gmra.mrb[0].mxu0 %v15
  %v734 = vpop.f32.mrb[0].mxu0
  %v735 = vadd.f32 %v650, %v734
  %v736 = vpop.f32.mrb[0].mxu0
  %737 = vmatprep.mubr.f32.mxu0 0.0
  %738 = vmatmul.mubr.f32.gmra.mrb[0].mxu0 %v16
  %v739 = vpop.f32.mrb[0].mxu0
  %v740 = vadd.f32 %v655, %v739
  %v741 = vpop.f32.mrb[0].mxu0
  %742 = vmatprep.mubr.f32.mxu0 0.0
  %743 = vmatmul.mubr.f32.gmra.mrb[0].mxu0 %v17
  %v744 = vpop.f32.mrb[0].mxu0
  %v745 = vadd.f32 %v660, %v744
  %v746 = vpop.f32.mrb[0].mxu0
  %747 = vdwg.mxu0
  %v748 = vmul.f32 %v266, %v730
  %v749 = vmul.f32 %v267, %v735
  %v750 = vmul.f32 %v268, %v740
  %v751 = vmul.f32 %v269, %v745
  %v752 = vadd.f32 %v748, %v749
  %v753 = vadd.f32 %v752, %v750
  %v754 = vadd.f32 %v753, %v751
  %v755 = vrot.slane %v754, 4
  %v756 = vadd.f32 %v754, %v755
  %v757 = vrot.slane %v756, 2
  %v758 = vadd.f32 %v756, %v757
  %v759 = vrot.slane %v758, 1
  %v760 = vadd.f32 %v758, %v759
  %v761 = vmul.f32 %v244, %v730
  %v762 = vsub.f32 %v761, %v760
  %vm763 = vcmp.le.f32.partialorder %v762, 1.0
  %v764 = vsel %vm763, 1.000001, %v762
  %v765 = vmul.f32 %v764, %v764
  %v766 = vsub.f32 %v765, 1.0
  %v767 = vrsqrt.pop %v766
  %v768 = vmul.f32 %v766, %v767
  %vm769 = vcmp.eq.f32.partialorder %v766, inf
  %v770 = vsel %vm769, %v766, %v768
  %vm771 = vcmp.eq.f32.partialorder %v766, 0.0
  %v772 = vand.u32 %v766, 2147483648
  %v773 = vsel %vm771, %v772, %v770
  %v774 = vadd.f32 %v764, %v773
  %v775 = vlog2.pop %v774
  %v776 = vmul.f32 %v775, 0.6931472
  %v777 = vsub.f32 0.0, %v776
  %v778 = vmul.f32 %v777, 1.442695
  %v779 = vpow.pop %v778
  %v780 = vadd.f32 %v524, %v779
  %v781 = vld [vmem:[%s0 + $0x3] sm:$0x1]
  %v782 = vlaneseq
  %v783 = vshrl.u32 %v782, 7
  %v784 = vsub.s32 0, %v783
  %v785 = vrot.slane %v781, %v784
  %vm786 = vcmp.eq.s32.totalorder %v23, %v785
  %vm787 = vcmp.eq.s32.totalorder %v24, %v785
  %vm788 = vcmp.eq.s32.totalorder %v25, %v785
  %vm789 = vcmp.eq.s32.totalorder %v26, %v785
  %vm790 = vcmp.eq.s32.totalorder %v27, %v785
  %vm791 = vcmp.eq.s32.totalorder %v28, %v785
  %vm792 = vcmp.eq.s32.totalorder %v29, %v785
  %vm793 = vcmp.eq.s32.totalorder %v30, %v785
  %vm794 = vcmp.eq.s32.totalorder %v31, %v785
  %vm795 = vcmp.eq.s32.totalorder %v32, %v785
  %vm796 = vcmp.eq.s32.totalorder %v33, %v785
  %vm797 = vcmp.eq.s32.totalorder %v34, %v785
  %vm798 = vcmp.eq.s32.totalorder %v35, %v785
  %vm799 = vcmp.eq.s32.totalorder %v36, %v785
  %vm800 = vcmp.eq.s32.totalorder %v37, %v785
  %vm801 = vcmp.eq.s32.totalorder %v38, %v785
  %v802 = vsel %vm786, 1, 0
  %v803 = vsel %vm787, 1, 0
  %v804 = vsel %vm788, 1, 0
  %v805 = vsel %vm789, 1, 0
  %v806 = vsel %vm790, 1, 0
  %v807 = vsel %vm791, 1, 0
  %v808 = vsel %vm792, 1, 0
  %v809 = vsel %vm793, 1, 0
  %v810 = vsel %vm794, 1, 0
  %v811 = vsel %vm795, 1, 0
  %v812 = vsel %vm796, 1, 0
  %v813 = vsel %vm797, 1, 0
  %v814 = vsel %vm798, 1, 0
  %v815 = vsel %vm799, 1, 0
  %v816 = vsel %vm800, 1, 0
  %v817 = vsel %vm801, 1, 0
  %v818 = vcvt.s32.f32 %v802
  %v819 = vcvt.s32.f32 %v803
  %v820 = vcvt.s32.f32 %v804
  %v821 = vcvt.s32.f32 %v805
  %v822 = vcvt.s32.f32 %v806
  %v823 = vcvt.s32.f32 %v807
  %v824 = vcvt.s32.f32 %v808
  %v825 = vcvt.s32.f32 %v809
  %v826 = vcvt.s32.f32 %v810
  %v827 = vcvt.s32.f32 %v811
  %v828 = vcvt.s32.f32 %v812
  %v829 = vcvt.s32.f32 %v813
  %v830 = vcvt.s32.f32 %v814
  %v831 = vcvt.s32.f32 %v815
  %v832 = vcvt.s32.f32 %v816
  %v833 = vcvt.s32.f32 %v817
  %834 = vmatprep.subr.mxu0 0.0
  %835 = vmatpush1.msra.mxu0 %v818
  %836 = vmatprep.subr.mxu0 0.0
  %837 = vmatpush1.msra.mxu0 %v819
  %838 = vmatprep.subr.mxu0 0.0
  %839 = vmatpush1.msra.mxu0 %v820
  %840 = vmatprep.subr.mxu0 0.0
  %841 = vmatpush1.msra.mxu0 %v821
  %842 = vmatprep.subr.mxu0 0.0
  %843 = vmatpush1.msra.mxu0 %v822
  %844 = vmatprep.subr.mxu0 0.0
  %845 = vmatpush1.msra.mxu0 %v823
  %846 = vmatprep.subr.mxu0 0.0
  %847 = vmatpush1.msra.mxu0 %v824
  %848 = vmatprep.subr.mxu0 0.0
  %849 = vmatpush1.msra.mxu0 %v825
  %850 = vmatprep.subr.mxu0 0.0
  %851 = vmatpush1.msra.mxu0 %v826
  %852 = vmatprep.subr.mxu0 0.0
  %853 = vmatpush1.msra.mxu0 %v827
  %854 = vmatprep.subr.mxu0 0.0
  %855 = vmatpush1.msra.mxu0 %v828
  %856 = vmatprep.subr.mxu0 0.0
  %857 = vmatpush1.msra.mxu0 %v829
  %858 = vmatprep.subr.mxu0 0.0
  %859 = vmatpush1.msra.mxu0 %v830
  %860 = vmatprep.subr.mxu0 0.0
  %861 = vmatpush1.msra.mxu0 %v831
  %862 = vmatprep.subr.mxu0 0.0
  %863 = vmatpush1.msra.mxu0 %v832
  %864 = vmatprep.subr.mxu0 0.0
  %865 = vmatpush1.msra.mxu0 %v833
  %866 = vmatprep.subr.mxu0 0.0
  %867 = vmatpush1.msra.mxu0 0.0
  %868 = vmatprep.subr.mxu0 0.0
  %869 = vmatpush1.msra.mxu0 0.0
  %870 = vmatprep.subr.mxu0 0.0
  %871 = vmatpush1.msra.mxu0 0.0
  %872 = vmatprep.subr.mxu0 0.0
  %873 = vmatpush1.msra.mxu0 0.0
  %874 = vmatprep.subr.mxu0 0.0
  %875 = vmatpush1.msra.mxu0 0.0
  %876 = vmatprep.subr.mxu0 0.0
  %877 = vmatpush1.msra.mxu0 0.0
  %878 = vmatprep.subr.mxu0 0.0
  %879 = vmatpush1.msra.mxu0 0.0
  %880 = vmatprep.subr.mxu0 0.0
  %881 = vmatpush1.msra.mxu0 0.0
  %882 = vmatprep.subr.mxu0 0.0
  %883 = vmatpush1.msra.mxu0 0.0
  %884 = vmatprep.subr.mxu0 0.0
  %885 = vmatpush1.msra.mxu0 0.0
  %886 = vmatprep.subr.mxu0 0.0
  %887 = vmatpush1.msra.mxu0 0.0
  %888 = vmatprep.subr.mxu0 0.0
  %889 = vmatpush1.msra.mxu0 0.0
  %890 = vmatprep.subr.mxu0 0.0
  %891 = vmatpush1.msra.mxu0 0.0
  %892 = vmatprep.subr.mxu0 0.0
  %893 = vmatpush1.msra.mxu0 0.0
  %894 = vmatprep.subr.mxu0 0.0
  %895 = vmatpush1.msra.mxu0 0.0
  %896 = vmatprep.subr.mxu0 0.0
  %897 = vmatpush1.msra.mxu0 0.0
  %898 = vmatprep.mubr.f32.mxu0 0.0
  %899 = vmatmul.mubr.f32.gmra.mrb[0].mxu0 %v18
  %v900 = vpop.f32.mrb[0].mxu0
  %v901 = vadd.f32 0.0, %v900
  %v902 = vpop.f32.mrb[0].mxu0
  %903 = vmatprep.mubr.f32.mxu0 0.0
  %904 = vmatmul.mubr.f32.gmra.mrb[0].mxu0 %v19
  %v905 = vpop.f32.mrb[0].mxu0
  %v906 = vadd.f32 0.0, %v905
  %v907 = vpop.f32.mrb[0].mxu0
  %908 = vmatprep.mubr.f32.mxu0 0.0
  %909 = vmatmul.mubr.f32.gmra.mrb[0].mxu0 %v20
  %v910 = vpop.f32.mrb[0].mxu0
  %v911 = vadd.f32 0.0, %v910
  %v912 = vpop.f32.mrb[0].mxu0
  %913 = vmatprep.mubr.f32.mxu0 0.0
  %914 = vmatmul.mubr.f32.gmra.mrb[0].mxu0 %v21
  %v915 = vpop.f32.mrb[0].mxu0
  %v916 = vadd.f32 0.0, %v915
  %v917 = vpop.f32.mrb[0].mxu0
  %918 = vdwg.mxu0
  %919 = vmatprep.subr.mxu0 0.0
  %920 = vmatpush1.msra.mxu0 %v818
  %921 = vmatprep.subr.mxu0 0.0
  %922 = vmatpush1.msra.mxu0 %v819
  %923 = vmatprep.subr.mxu0 0.0
  %924 = vmatpush1.msra.mxu0 %v820
  %925 = vmatprep.subr.mxu0 0.0
  %926 = vmatpush1.msra.mxu0 %v821
  %927 = vmatprep.subr.mxu0 0.0
  %928 = vmatpush1.msra.mxu0 %v822
  %929 = vmatprep.subr.mxu0 0.0
  %930 = vmatpush1.msra.mxu0 %v823
  %931 = vmatprep.subr.mxu0 0.0
  %932 = vmatpush1.msra.mxu0 %v824
  %933 = vmatprep.subr.mxu0 0.0
  %934 = vmatpush1.msra.mxu0 %v825
  %935 = vmatprep.subr.mxu0 0.0
  %936 = vmatpush1.msra.mxu0 %v826
  %937 = vmatprep.subr.mxu0 0.0
  %938 = vmatpush1.msra.mxu0 %v827
  %939 = vmatprep.subr.mxu0 0.0
  %940 = vmatpush1.msra.mxu0 %v828
  %941 = vmatprep.subr.mxu0 0.0
  %942 = vmatpush1.msra.mxu0 %v829
  %943 = vmatprep.subr.mxu0 0.0
  %944 = vmatpush1.msra.mxu0 %v830
  %945 = vmatprep.subr.mxu0 0.0
  %946 = vmatpush1.msra.mxu0 %v831
  %947 = vmatprep.subr.mxu0 0.0
  %948 = vmatpush1.msra.mxu0 %v832
  %949 = vmatprep.subr.mxu0 0.0
  %950 = vmatpush1.msra.mxu0 %v833
  %951 = vmatprep.subr.mxu0 0.0
  %952 = vmatpush1.msra.mxu0 0.0
  %953 = vmatprep.subr.mxu0 0.0
  %954 = vmatpush1.msra.mxu0 0.0
  %955 = vmatprep.subr.mxu0 0.0
  %956 = vmatpush1.msra.mxu0 0.0
  %957 = vmatprep.subr.mxu0 0.0
  %958 = vmatpush1.msra.mxu0 0.0
  %959 = vmatprep.subr.mxu0 0.0
  %960 = vmatpush1.msra.mxu0 0.0
  %961 = vmatprep.subr.mxu0 0.0
  %962 = vmatpush1.msra.mxu0 0.0
  %963 = vmatprep.subr.mxu0 0.0
  %964 = vmatpush1.msra.mxu0 0.0
  %965 = vmatprep.subr.mxu0 0.0
  %966 = vmatpush1.msra.mxu0 0.0
  %967 = vmatprep.subr.mxu0 0.0
  %968 = vmatpush1.msra.mxu0 0.0
  %969 = vmatprep.subr.mxu0 0.0
  %970 = vmatpush1.msra.mxu0 0.0
  %971 = vmatprep.subr.mxu0 0.0
  %972 = vmatpush1.msra.mxu0 0.0
  %973 = vmatprep.subr.mxu0 0.0
  %974 = vmatpush1.msra.mxu0 0.0
  %975 = vmatprep.subr.mxu0 0.0
  %976 = vmatpush1.msra.mxu0 0.0
  %977 = vmatprep.subr.mxu0 0.0
  %978 = vmatpush1.msra.mxu0 0.0
  %979 = vmatprep.subr.mxu0 0.0
  %980 = vmatpush1.msra.mxu0 0.0
  %981 = vmatprep.subr.mxu0 0.0
  %982 = vmatpush1.msra.mxu0 0.0
  %983 = vmatprep.mubr.f32.mxu0 0.0
  %984 = vmatmul.mubr.f32.gmra.mrb[0].mxu0 %v14
  %v985 = vpop.f32.mrb[0].mxu0
  %v986 = vadd.f32 %v901, %v985
  %v987 = vpop.f32.mrb[0].mxu0
  %988 = vmatprep.mubr.f32.mxu0 0.0
  %989 = vmatmul.mubr.f32.gmra.mrb[0].mxu0 %v15
  %v990 = vpop.f32.mrb[0].mxu0
  %v991 = vadd.f32 %v906, %v990
  %v992 = vpop.f32.mrb[0].mxu0
  %993 = vmatprep.mubr.f32.mxu0 0.0
  %994 = vmatmul.mubr.f32.gmra.mrb[0].mxu0 %v16
  %v995 = vpop.f32.mrb[0].mxu0
  %v996 = vadd.f32 %v911, %v995
  %v997 = vpop.f32.mrb[0].mxu0
  %998 = vmatprep.mubr.f32.mxu0 0.0
  %999 = vmatmul.mubr.f32.gmra.mrb[0].mxu0 %v17
  %v1000 = vpop.f32.mrb[0].mxu0
  %v1001 = vadd.f32 %v916, %v1000
  %v1002 = vpop.f32.mrb[0].mxu0
  %1003 = vdwg.mxu0
  %v1004 = vmul.f32 %v266, %v986
  %v1005 = vmul.f32 %v267, %v991
  %v1006 = vmul.f32 %v268, %v996
  %v1007 = vmul.f32 %v269, %v1001
  %v1008 = vadd.f32 %v1004, %v1005
  %v1009 = vadd.f32 %v1008, %v1006
  %v1010 = vadd.f32 %v1009, %v1007
  %v1011 = vrot.slane %v1010, 4
  %v1012 = vadd.f32 %v1010, %v1011
  %v1013 = vrot.slane %v1012, 2
  %v1014 = vadd.f32 %v1012, %v1013
  %v1015 = vrot.slane %v1014, 1
  %v1016 = vadd.f32 %v1014, %v1015
  %v1017 = vmul.f32 %v244, %v986
  %v1018 = vsub.f32 %v1017, %v1016
  %vm1019 = vcmp.le.f32.partialorder %v1018, 1.0
  %v1020 = vsel %vm1019, 1.000001, %v1018
  %v1021 = vmul.f32 %v1020, %v1020
  %v1022 = vsub.f32 %v1021, 1.0
  %v1023 = vrsqrt.pop %v1022
  %v1024 = vmul.f32 %v1022, %v1023
  %vm1025 = vcmp.eq.f32.partialorder %v1022, inf
  %v1026 = vsel %vm1025, %v1022, %v1024
  %vm1027 = vcmp.eq.f32.partialorder %v1022, 0.0
  %v1028 = vand.u32 %v1022, 2147483648
  %v1029 = vsel %vm1027, %v1028, %v1026
  %v1030 = vadd.f32 %v1020, %v1029
  %v1031 = vlog2.pop %v1030
  %v1032 = vmul.f32 %v1031, 0.6931472
  %v1033 = vsub.f32 0.0, %v1032
  %v1034 = vmul.f32 %v1033, 1.442695
  %v1035 = vpow.pop %v1034
  %v1036 = vadd.f32 %v780, %v1035
  %v1037 = vld [vmem:[%s0 + $0x4] sm:$0x1]
  %v1038 = vlaneseq
  %v1039 = vshrl.u32 %v1038, 7
  %v1040 = vsub.s32 0, %v1039
  %v1041 = vrot.slane %v1037, %v1040
  %vm1042 = vcmp.eq.s32.totalorder %v23, %v1041
  %vm1043 = vcmp.eq.s32.totalorder %v24, %v1041
  %vm1044 = vcmp.eq.s32.totalorder %v25, %v1041
  %vm1045 = vcmp.eq.s32.totalorder %v26, %v1041
  %vm1046 = vcmp.eq.s32.totalorder %v27, %v1041
  %vm1047 = vcmp.eq.s32.totalorder %v28, %v1041
  %vm1048 = vcmp.eq.s32.totalorder %v29, %v1041
  %vm1049 = vcmp.eq.s32.totalorder %v30, %v1041
  %vm1050 = vcmp.eq.s32.totalorder %v31, %v1041
  %vm1051 = vcmp.eq.s32.totalorder %v32, %v1041
  %vm1052 = vcmp.eq.s32.totalorder %v33, %v1041
  %vm1053 = vcmp.eq.s32.totalorder %v34, %v1041
  %vm1054 = vcmp.eq.s32.totalorder %v35, %v1041
  %vm1055 = vcmp.eq.s32.totalorder %v36, %v1041
  %vm1056 = vcmp.eq.s32.totalorder %v37, %v1041
  %vm1057 = vcmp.eq.s32.totalorder %v38, %v1041
  %v1058 = vsel %vm1042, 1, 0
  %v1059 = vsel %vm1043, 1, 0
  %v1060 = vsel %vm1044, 1, 0
  %v1061 = vsel %vm1045, 1, 0
  %v1062 = vsel %vm1046, 1, 0
  %v1063 = vsel %vm1047, 1, 0
  %v1064 = vsel %vm1048, 1, 0
  %v1065 = vsel %vm1049, 1, 0
  %v1066 = vsel %vm1050, 1, 0
  %v1067 = vsel %vm1051, 1, 0
  %v1068 = vsel %vm1052, 1, 0
  %v1069 = vsel %vm1053, 1, 0
  %v1070 = vsel %vm1054, 1, 0
  %v1071 = vsel %vm1055, 1, 0
  %v1072 = vsel %vm1056, 1, 0
  %v1073 = vsel %vm1057, 1, 0
  %v1074 = vcvt.s32.f32 %v1058
  %v1075 = vcvt.s32.f32 %v1059
  %v1076 = vcvt.s32.f32 %v1060
  %v1077 = vcvt.s32.f32 %v1061
  %v1078 = vcvt.s32.f32 %v1062
  %v1079 = vcvt.s32.f32 %v1063
  %v1080 = vcvt.s32.f32 %v1064
  %v1081 = vcvt.s32.f32 %v1065
  %v1082 = vcvt.s32.f32 %v1066
  %v1083 = vcvt.s32.f32 %v1067
  %v1084 = vcvt.s32.f32 %v1068
  %v1085 = vcvt.s32.f32 %v1069
  %v1086 = vcvt.s32.f32 %v1070
  %v1087 = vcvt.s32.f32 %v1071
  %v1088 = vcvt.s32.f32 %v1072
  %v1089 = vcvt.s32.f32 %v1073
  %1090 = vmatprep.subr.mxu0 0.0
  %1091 = vmatpush1.msra.mxu0 %v1074
  %1092 = vmatprep.subr.mxu0 0.0
  %1093 = vmatpush1.msra.mxu0 %v1075
  %1094 = vmatprep.subr.mxu0 0.0
  %1095 = vmatpush1.msra.mxu0 %v1076
  %1096 = vmatprep.subr.mxu0 0.0
  %1097 = vmatpush1.msra.mxu0 %v1077
  %1098 = vmatprep.subr.mxu0 0.0
  %1099 = vmatpush1.msra.mxu0 %v1078
  %1100 = vmatprep.subr.mxu0 0.0
  %1101 = vmatpush1.msra.mxu0 %v1079
  %1102 = vmatprep.subr.mxu0 0.0
  %1103 = vmatpush1.msra.mxu0 %v1080
  %1104 = vmatprep.subr.mxu0 0.0
  %1105 = vmatpush1.msra.mxu0 %v1081
  %1106 = vmatprep.subr.mxu0 0.0
  %1107 = vmatpush1.msra.mxu0 %v1082
  %1108 = vmatprep.subr.mxu0 0.0
  %1109 = vmatpush1.msra.mxu0 %v1083
  %1110 = vmatprep.subr.mxu0 0.0
  %1111 = vmatpush1.msra.mxu0 %v1084
  %1112 = vmatprep.subr.mxu0 0.0
  %1113 = vmatpush1.msra.mxu0 %v1085
  %1114 = vmatprep.subr.mxu0 0.0
  %1115 = vmatpush1.msra.mxu0 %v1086
  %1116 = vmatprep.subr.mxu0 0.0
  %1117 = vmatpush1.msra.mxu0 %v1087
  %1118 = vmatprep.subr.mxu0 0.0
  %1119 = vmatpush1.msra.mxu0 %v1088
  %1120 = vmatprep.subr.mxu0 0.0
  %1121 = vmatpush1.msra.mxu0 %v1089
  %1122 = vmatprep.subr.mxu0 0.0
  %1123 = vmatpush1.msra.mxu0 0.0
  %1124 = vmatprep.subr.mxu0 0.0
  %1125 = vmatpush1.msra.mxu0 0.0
  %1126 = vmatprep.subr.mxu0 0.0
  %1127 = vmatpush1.msra.mxu0 0.0
  %1128 = vmatprep.subr.mxu0 0.0
  %1129 = vmatpush1.msra.mxu0 0.0
  %1130 = vmatprep.subr.mxu0 0.0
  %1131 = vmatpush1.msra.mxu0 0.0
  %1132 = vmatprep.subr.mxu0 0.0
  %1133 = vmatpush1.msra.mxu0 0.0
  %1134 = vmatprep.subr.mxu0 0.0
  %1135 = vmatpush1.msra.mxu0 0.0
  %1136 = vmatprep.subr.mxu0 0.0
  %1137 = vmatpush1.msra.mxu0 0.0
  %1138 = vmatprep.subr.mxu0 0.0
  %1139 = vmatpush1.msra.mxu0 0.0
  %1140 = vmatprep.subr.mxu0 0.0
  %1141 = vmatpush1.msra.mxu0 0.0
  %1142 = vmatprep.subr.mxu0 0.0
  %1143 = vmatpush1.msra.mxu0 0.0
  %1144 = vmatprep.subr.mxu0 0.0
  %1145 = vmatpush1.msra.mxu0 0.0
  %1146 = vmatprep.subr.mxu0 0.0
  %1147 = vmatpush1.msra.mxu0 0.0
  %1148 = vmatprep.subr.mxu0 0.0
  %1149 = vmatpush1.msra.mxu0 0.0
  %1150 = vmatprep.subr.mxu0 0.0
  %1151 = vmatpush1.msra.mxu0 0.0
  %1152 = vmatprep.subr.mxu0 0.0
  %1153 = vmatpush1.msra.mxu0 0.0
  %1154 = vmatprep.mubr.f32.mxu0 0.0
  %1155 = vmatmul.mubr.f32.gmra.mrb[0].mxu0 %v18
  %v1156 = vpop.f32.mrb[0].mxu0
  %v1157 = vadd.f32 0.0, %v1156
  %v1158 = vpop.f32.mrb[0].mxu0
  %1159 = vmatprep.mubr.f32.mxu0 0.0
  %1160 = vmatmul.mubr.f32.gmra.mrb[0].mxu0 %v19
  %v1161 = vpop.f32.mrb[0].mxu0
  %v1162 = vadd.f32 0.0, %v1161
  %v1163 = vpop.f32.mrb[0].mxu0
  %1164 = vmatprep.mubr.f32.mxu0 0.0
  %1165 = vmatmul.mubr.f32.gmra.mrb[0].mxu0 %v20
  %v1166 = vpop.f32.mrb[0].mxu0
  %v1167 = vadd.f32 0.0, %v1166
  %v1168 = vpop.f32.mrb[0].mxu0
  %1169 = vmatprep.mubr.f32.mxu0 0.0
  %1170 = vmatmul.mubr.f32.gmra.mrb[0].mxu0 %v21
  %v1171 = vpop.f32.mrb[0].mxu0
  %v1172 = vadd.f32 0.0, %v1171
  %v1173 = vpop.f32.mrb[0].mxu0
  %1174 = vdwg.mxu0
  %1175 = vmatprep.subr.mxu0 0.0
  %1176 = vmatpush1.msra.mxu0 %v1074
  %1177 = vmatprep.subr.mxu0 0.0
  %1178 = vmatpush1.msra.mxu0 %v1075
  %1179 = vmatprep.subr.mxu0 0.0
  %1180 = vmatpush1.msra.mxu0 %v1076
  %1181 = vmatprep.subr.mxu0 0.0
  %1182 = vmatpush1.msra.mxu0 %v1077
  %1183 = vmatprep.subr.mxu0 0.0
  %1184 = vmatpush1.msra.mxu0 %v1078
  %1185 = vmatprep.subr.mxu0 0.0
  %1186 = vmatpush1.msra.mxu0 %v1079
  %1187 = vmatprep.subr.mxu0 0.0
  %1188 = vmatpush1.msra.mxu0 %v1080
  %1189 = vmatprep.subr.mxu0 0.0
  %1190 = vmatpush1.msra.mxu0 %v1081
  %1191 = vmatprep.subr.mxu0 0.0
  %1192 = vmatpush1.msra.mxu0 %v1082
  %1193 = vmatprep.subr.mxu0 0.0
  %1194 = vmatpush1.msra.mxu0 %v1083
  %1195 = vmatprep.subr.mxu0 0.0
  %1196 = vmatpush1.msra.mxu0 %v1084
  %1197 = vmatprep.subr.mxu0 0.0
  %1198 = vmatpush1.msra.mxu0 %v1085
  %1199 = vmatprep.subr.mxu0 0.0
  %1200 = vmatpush1.msra.mxu0 %v1086
  %1201 = vmatprep.subr.mxu0 0.0
  %1202 = vmatpush1.msra.mxu0 %v1087
  %1203 = vmatprep.subr.mxu0 0.0
  %1204 = vmatpush1.msra.mxu0 %v1088
  %1205 = vmatprep.subr.mxu0 0.0
  %1206 = vmatpush1.msra.mxu0 %v1089
  %1207 = vmatprep.subr.mxu0 0.0
  %1208 = vmatpush1.msra.mxu0 0.0
  %1209 = vmatprep.subr.mxu0 0.0
  %1210 = vmatpush1.msra.mxu0 0.0
  %1211 = vmatprep.subr.mxu0 0.0
  %1212 = vmatpush1.msra.mxu0 0.0
  %1213 = vmatprep.subr.mxu0 0.0
  %1214 = vmatpush1.msra.mxu0 0.0
  %1215 = vmatprep.subr.mxu0 0.0
  %1216 = vmatpush1.msra.mxu0 0.0
  %1217 = vmatprep.subr.mxu0 0.0
  %1218 = vmatpush1.msra.mxu0 0.0
  %1219 = vmatprep.subr.mxu0 0.0
  %1220 = vmatpush1.msra.mxu0 0.0
  %1221 = vmatprep.subr.mxu0 0.0
  %1222 = vmatpush1.msra.mxu0 0.0
  %1223 = vmatprep.subr.mxu0 0.0
  %1224 = vmatpush1.msra.mxu0 0.0
  %1225 = vmatprep.subr.mxu0 0.0
  %1226 = vmatpush1.msra.mxu0 0.0
  %1227 = vmatprep.subr.mxu0 0.0
  %1228 = vmatpush1.msra.mxu0 0.0
  %1229 = vmatprep.subr.mxu0 0.0
  %1230 = vmatpush1.msra.mxu0 0.0
  %1231 = vmatprep.subr.mxu0 0.0
  %1232 = vmatpush1.msra.mxu0 0.0
  %1233 = vmatprep.subr.mxu0 0.0
  %1234 = vmatpush1.msra.mxu0 0.0
  %1235 = vmatprep.subr.mxu0 0.0
  %1236 = vmatpush1.msra.mxu0 0.0
  %1237 = vmatprep.subr.mxu0 0.0
  %1238 = vmatpush1.msra.mxu0 0.0
  %1239 = vmatprep.mubr.f32.mxu0 0.0
  %1240 = vmatmul.mubr.f32.gmra.mrb[0].mxu0 %v14
  %v1241 = vpop.f32.mrb[0].mxu0
  %v1242 = vadd.f32 %v1157, %v1241
  %v1243 = vpop.f32.mrb[0].mxu0
  %1244 = vmatprep.mubr.f32.mxu0 0.0
  %1245 = vmatmul.mubr.f32.gmra.mrb[0].mxu0 %v15
  %v1246 = vpop.f32.mrb[0].mxu0
  %v1247 = vadd.f32 %v1162, %v1246
  %v1248 = vpop.f32.mrb[0].mxu0
  %1249 = vmatprep.mubr.f32.mxu0 0.0
  %1250 = vmatmul.mubr.f32.gmra.mrb[0].mxu0 %v16
  %v1251 = vpop.f32.mrb[0].mxu0
  %v1252 = vadd.f32 %v1167, %v1251
  %v1253 = vpop.f32.mrb[0].mxu0
  %1254 = vmatprep.mubr.f32.mxu0 0.0
  %1255 = vmatmul.mubr.f32.gmra.mrb[0].mxu0 %v17
  %v1256 = vpop.f32.mrb[0].mxu0
  %v1257 = vadd.f32 %v1172, %v1256
  %v1258 = vpop.f32.mrb[0].mxu0
  %1259 = vdwg.mxu0
  %v1260 = vmul.f32 %v266, %v1242
  %v1261 = vmul.f32 %v267, %v1247
  %v1262 = vmul.f32 %v268, %v1252
  %v1263 = vmul.f32 %v269, %v1257
  %v1264 = vadd.f32 %v1260, %v1261
  %v1265 = vadd.f32 %v1264, %v1262
  %v1266 = vadd.f32 %v1265, %v1263
  %v1267 = vrot.slane %v1266, 4
  %v1268 = vadd.f32 %v1266, %v1267
  %v1269 = vrot.slane %v1268, 2
  %v1270 = vadd.f32 %v1268, %v1269
  %v1271 = vrot.slane %v1270, 1
  %v1272 = vadd.f32 %v1270, %v1271
  %v1273 = vmul.f32 %v244, %v1242
  %v1274 = vsub.f32 %v1273, %v1272
  %vm1275 = vcmp.le.f32.partialorder %v1274, 1.0
  %v1276 = vsel %vm1275, 1.000001, %v1274
  %v1277 = vmul.f32 %v1276, %v1276
  %v1278 = vsub.f32 %v1277, 1.0
  %v1279 = vrsqrt.pop %v1278
  %v1280 = vmul.f32 %v1278, %v1279
  %vm1281 = vcmp.eq.f32.partialorder %v1278, inf
  %v1282 = vsel %vm1281, %v1278, %v1280
  %vm1283 = vcmp.eq.f32.partialorder %v1278, 0.0
  %v1284 = vand.u32 %v1278, 2147483648
  %v1285 = vsel %vm1283, %v1284, %v1282
  %v1286 = vadd.f32 %v1276, %v1285
  %v1287 = vlog2.pop %v1286
  %v1288 = vmul.f32 %v1287, 0.6931472
  %v1289 = vsub.f32 0.0, %v1288
  %v1290 = vmul.f32 %v1289, 1.442695
  %v1291 = vpow.pop %v1290
  %v1292 = vadd.f32 %v1036, %v1291
  %v1293 = vld [vmem:[%s0 + $0x5] sm:$0x1]
  %v1294 = vlaneseq
  %v1295 = vshrl.u32 %v1294, 7
  %v1296 = vsub.s32 0, %v1295
  %v1297 = vrot.slane %v1293, %v1296
  %vm1298 = vcmp.eq.s32.totalorder %v23, %v1297
  %vm1299 = vcmp.eq.s32.totalorder %v24, %v1297
  %vm1300 = vcmp.eq.s32.totalorder %v25, %v1297
  %vm1301 = vcmp.eq.s32.totalorder %v26, %v1297
  %vm1302 = vcmp.eq.s32.totalorder %v27, %v1297
  %vm1303 = vcmp.eq.s32.totalorder %v28, %v1297
  %vm1304 = vcmp.eq.s32.totalorder %v29, %v1297
  %vm1305 = vcmp.eq.s32.totalorder %v30, %v1297
  %vm1306 = vcmp.eq.s32.totalorder %v31, %v1297
  %vm1307 = vcmp.eq.s32.totalorder %v32, %v1297
  %vm1308 = vcmp.eq.s32.totalorder %v33, %v1297
  %vm1309 = vcmp.eq.s32.totalorder %v34, %v1297
  %vm1310 = vcmp.eq.s32.totalorder %v35, %v1297
  %vm1311 = vcmp.eq.s32.totalorder %v36, %v1297
  %vm1312 = vcmp.eq.s32.totalorder %v37, %v1297
  %vm1313 = vcmp.eq.s32.totalorder %v38, %v1297
  %v1314 = vsel %vm1298, 1, 0
  %v1315 = vsel %vm1299, 1, 0
  %v1316 = vsel %vm1300, 1, 0
  %v1317 = vsel %vm1301, 1, 0
  %v1318 = vsel %vm1302, 1, 0
  %v1319 = vsel %vm1303, 1, 0
  %v1320 = vsel %vm1304, 1, 0
  %v1321 = vsel %vm1305, 1, 0
  %v1322 = vsel %vm1306, 1, 0
  %v1323 = vsel %vm1307, 1, 0
  %v1324 = vsel %vm1308, 1, 0
  %v1325 = vsel %vm1309, 1, 0
  %v1326 = vsel %vm1310, 1, 0
  %v1327 = vsel %vm1311, 1, 0
  %v1328 = vsel %vm1312, 1, 0
  %v1329 = vsel %vm1313, 1, 0
  %v1330 = vcvt.s32.f32 %v1314
  %v1331 = vcvt.s32.f32 %v1315
  %v1332 = vcvt.s32.f32 %v1316
  %v1333 = vcvt.s32.f32 %v1317
  %v1334 = vcvt.s32.f32 %v1318
  %v1335 = vcvt.s32.f32 %v1319
  %v1336 = vcvt.s32.f32 %v1320
  %v1337 = vcvt.s32.f32 %v1321
  %v1338 = vcvt.s32.f32 %v1322
  %v1339 = vcvt.s32.f32 %v1323
  %v1340 = vcvt.s32.f32 %v1324
  %v1341 = vcvt.s32.f32 %v1325
  %v1342 = vcvt.s32.f32 %v1326
  %v1343 = vcvt.s32.f32 %v1327
  %v1344 = vcvt.s32.f32 %v1328
  %v1345 = vcvt.s32.f32 %v1329
  %1346 = vmatprep.subr.mxu0 0.0
  %1347 = vmatpush1.msra.mxu0 %v1330
  %1348 = vmatprep.subr.mxu0 0.0
  %1349 = vmatpush1.msra.mxu0 %v1331
  %1350 = vmatprep.subr.mxu0 0.0
  %1351 = vmatpush1.msra.mxu0 %v1332
  %1352 = vmatprep.subr.mxu0 0.0
  %1353 = vmatpush1.msra.mxu0 %v1333
  %1354 = vmatprep.subr.mxu0 0.0
  %1355 = vmatpush1.msra.mxu0 %v1334
  %1356 = vmatprep.subr.mxu0 0.0
  %1357 = vmatpush1.msra.mxu0 %v1335
  %1358 = vmatprep.subr.mxu0 0.0
  %1359 = vmatpush1.msra.mxu0 %v1336
  %1360 = vmatprep.subr.mxu0 0.0
  %1361 = vmatpush1.msra.mxu0 %v1337
  %1362 = vmatprep.subr.mxu0 0.0
  %1363 = vmatpush1.msra.mxu0 %v1338
  %1364 = vmatprep.subr.mxu0 0.0
  %1365 = vmatpush1.msra.mxu0 %v1339
  %1366 = vmatprep.subr.mxu0 0.0
  %1367 = vmatpush1.msra.mxu0 %v1340
  %1368 = vmatprep.subr.mxu0 0.0
  %1369 = vmatpush1.msra.mxu0 %v1341
  %1370 = vmatprep.subr.mxu0 0.0
  %1371 = vmatpush1.msra.mxu0 %v1342
  %1372 = vmatprep.subr.mxu0 0.0
  %1373 = vmatpush1.msra.mxu0 %v1343
  %1374 = vmatprep.subr.mxu0 0.0
  %1375 = vmatpush1.msra.mxu0 %v1344
  %1376 = vmatprep.subr.mxu0 0.0
  %1377 = vmatpush1.msra.mxu0 %v1345
  %1378 = vmatprep.subr.mxu0 0.0
  %1379 = vmatpush1.msra.mxu0 0.0
  %1380 = vmatprep.subr.mxu0 0.0
  %1381 = vmatpush1.msra.mxu0 0.0
  %1382 = vmatprep.subr.mxu0 0.0
  %1383 = vmatpush1.msra.mxu0 0.0
  %1384 = vmatprep.subr.mxu0 0.0
  %1385 = vmatpush1.msra.mxu0 0.0
  %1386 = vmatprep.subr.mxu0 0.0
  %1387 = vmatpush1.msra.mxu0 0.0
  %1388 = vmatprep.subr.mxu0 0.0
  %1389 = vmatpush1.msra.mxu0 0.0
  %1390 = vmatprep.subr.mxu0 0.0
  %1391 = vmatpush1.msra.mxu0 0.0
  %1392 = vmatprep.subr.mxu0 0.0
  %1393 = vmatpush1.msra.mxu0 0.0
  %1394 = vmatprep.subr.mxu0 0.0
  %1395 = vmatpush1.msra.mxu0 0.0
  %1396 = vmatprep.subr.mxu0 0.0
  %1397 = vmatpush1.msra.mxu0 0.0
  %1398 = vmatprep.subr.mxu0 0.0
  %1399 = vmatpush1.msra.mxu0 0.0
  %1400 = vmatprep.subr.mxu0 0.0
  %1401 = vmatpush1.msra.mxu0 0.0
  %1402 = vmatprep.subr.mxu0 0.0
  %1403 = vmatpush1.msra.mxu0 0.0
  %1404 = vmatprep.subr.mxu0 0.0
  %1405 = vmatpush1.msra.mxu0 0.0
  %1406 = vmatprep.subr.mxu0 0.0
  %1407 = vmatpush1.msra.mxu0 0.0
  %1408 = vmatprep.subr.mxu0 0.0
  %1409 = vmatpush1.msra.mxu0 0.0
  %1410 = vmatprep.mubr.f32.mxu0 0.0
  %1411 = vmatmul.mubr.f32.gmra.mrb[0].mxu0 %v18
  %v1412 = vpop.f32.mrb[0].mxu0
  %v1413 = vadd.f32 0.0, %v1412
  %v1414 = vpop.f32.mrb[0].mxu0
  %1415 = vmatprep.mubr.f32.mxu0 0.0
  %1416 = vmatmul.mubr.f32.gmra.mrb[0].mxu0 %v19
  %v1417 = vpop.f32.mrb[0].mxu0
  %v1418 = vadd.f32 0.0, %v1417
  %v1419 = vpop.f32.mrb[0].mxu0
  %1420 = vmatprep.mubr.f32.mxu0 0.0
  %1421 = vmatmul.mubr.f32.gmra.mrb[0].mxu0 %v20
  %v1422 = vpop.f32.mrb[0].mxu0
  %v1423 = vadd.f32 0.0, %v1422
  %v1424 = vpop.f32.mrb[0].mxu0
  %1425 = vmatprep.mubr.f32.mxu0 0.0
  %1426 = vmatmul.mubr.f32.gmra.mrb[0].mxu0 %v21
  %v1427 = vpop.f32.mrb[0].mxu0
  %v1428 = vadd.f32 0.0, %v1427
  %v1429 = vpop.f32.mrb[0].mxu0
  %1430 = vdwg.mxu0
  %1431 = vmatprep.subr.mxu0 0.0
  %1432 = vmatpush1.msra.mxu0 %v1330
  %1433 = vmatprep.subr.mxu0 0.0
  %1434 = vmatpush1.msra.mxu0 %v1331
  %1435 = vmatprep.subr.mxu0 0.0
  %1436 = vmatpush1.msra.mxu0 %v1332
  %1437 = vmatprep.subr.mxu0 0.0
  %1438 = vmatpush1.msra.mxu0 %v1333
  %1439 = vmatprep.subr.mxu0 0.0
  %1440 = vmatpush1.msra.mxu0 %v1334
  %1441 = vmatprep.subr.mxu0 0.0
  %1442 = vmatpush1.msra.mxu0 %v1335
  %1443 = vmatprep.subr.mxu0 0.0
  %1444 = vmatpush1.msra.mxu0 %v1336
  %1445 = vmatprep.subr.mxu0 0.0
  %1446 = vmatpush1.msra.mxu0 %v1337
  %1447 = vmatprep.subr.mxu0 0.0
  %1448 = vmatpush1.msra.mxu0 %v1338
  %1449 = vmatprep.subr.mxu0 0.0
  %1450 = vmatpush1.msra.mxu0 %v1339
  %1451 = vmatprep.subr.mxu0 0.0
  %1452 = vmatpush1.msra.mxu0 %v1340
  %1453 = vmatprep.subr.mxu0 0.0
  %1454 = vmatpush1.msra.mxu0 %v1341
  %1455 = vmatprep.subr.mxu0 0.0
  %1456 = vmatpush1.msra.mxu0 %v1342
  %1457 = vmatprep.subr.mxu0 0.0
  %1458 = vmatpush1.msra.mxu0 %v1343
  %1459 = vmatprep.subr.mxu0 0.0
  %1460 = vmatpush1.msra.mxu0 %v1344
  %1461 = vmatprep.subr.mxu0 0.0
  %1462 = vmatpush1.msra.mxu0 %v1345
  %1463 = vmatprep.subr.mxu0 0.0
  %1464 = vmatpush1.msra.mxu0 0.0
  %1465 = vmatprep.subr.mxu0 0.0
  %1466 = vmatpush1.msra.mxu0 0.0
  %1467 = vmatprep.subr.mxu0 0.0
  %1468 = vmatpush1.msra.mxu0 0.0
  %1469 = vmatprep.subr.mxu0 0.0
  %1470 = vmatpush1.msra.mxu0 0.0
  %1471 = vmatprep.subr.mxu0 0.0
  %1472 = vmatpush1.msra.mxu0 0.0
  %1473 = vmatprep.subr.mxu0 0.0
  %1474 = vmatpush1.msra.mxu0 0.0
  %1475 = vmatprep.subr.mxu0 0.0
  %1476 = vmatpush1.msra.mxu0 0.0
  %1477 = vmatprep.subr.mxu0 0.0
  %1478 = vmatpush1.msra.mxu0 0.0
  %1479 = vmatprep.subr.mxu0 0.0
  %1480 = vmatpush1.msra.mxu0 0.0
  %1481 = vmatprep.subr.mxu0 0.0
  %1482 = vmatpush1.msra.mxu0 0.0
  %1483 = vmatprep.subr.mxu0 0.0
  %1484 = vmatpush1.msra.mxu0 0.0
  %1485 = vmatprep.subr.mxu0 0.0
  %1486 = vmatpush1.msra.mxu0 0.0
  %1487 = vmatprep.subr.mxu0 0.0
  %1488 = vmatpush1.msra.mxu0 0.0
  %1489 = vmatprep.subr.mxu0 0.0
  %1490 = vmatpush1.msra.mxu0 0.0
  %1491 = vmatprep.subr.mxu0 0.0
  %1492 = vmatpush1.msra.mxu0 0.0
  %1493 = vmatprep.subr.mxu0 0.0
  %1494 = vmatpush1.msra.mxu0 0.0
  %1495 = vmatprep.mubr.f32.mxu0 0.0
  %1496 = vmatmul.mubr.f32.gmra.mrb[0].mxu0 %v14
  %v1497 = vpop.f32.mrb[0].mxu0
  %v1498 = vadd.f32 %v1413, %v1497
  %v1499 = vpop.f32.mrb[0].mxu0
  %1500 = vmatprep.mubr.f32.mxu0 0.0
  %1501 = vmatmul.mubr.f32.gmra.mrb[0].mxu0 %v15
  %v1502 = vpop.f32.mrb[0].mxu0
  %v1503 = vadd.f32 %v1418, %v1502
  %v1504 = vpop.f32.mrb[0].mxu0
  %1505 = vmatprep.mubr.f32.mxu0 0.0
  %1506 = vmatmul.mubr.f32.gmra.mrb[0].mxu0 %v16
  %v1507 = vpop.f32.mrb[0].mxu0
  %v1508 = vadd.f32 %v1423, %v1507
  %v1509 = vpop.f32.mrb[0].mxu0
  %1510 = vmatprep.mubr.f32.mxu0 0.0
  %1511 = vmatmul.mubr.f32.gmra.mrb[0].mxu0 %v17
  %v1512 = vpop.f32.mrb[0].mxu0
  %v1513 = vadd.f32 %v1428, %v1512
  %v1514 = vpop.f32.mrb[0].mxu0
  %1515 = vdwg.mxu0
  %v1516 = vmul.f32 %v266, %v1498
  %v1517 = vmul.f32 %v267, %v1503
  %v1518 = vmul.f32 %v268, %v1508
  %v1519 = vmul.f32 %v269, %v1513
  %v1520 = vadd.f32 %v1516, %v1517
  %v1521 = vadd.f32 %v1520, %v1518
  %v1522 = vadd.f32 %v1521, %v1519
  %v1523 = vrot.slane %v1522, 4
  %v1524 = vadd.f32 %v1522, %v1523
  %v1525 = vrot.slane %v1524, 2
  %v1526 = vadd.f32 %v1524, %v1525
  %v1527 = vrot.slane %v1526, 1
  %v1528 = vadd.f32 %v1526, %v1527
  %v1529 = vmul.f32 %v244, %v1498
  %v1530 = vsub.f32 %v1529, %v1528
  %vm1531 = vcmp.le.f32.partialorder %v1530, 1.0
  %v1532 = vsel %vm1531, 1.000001, %v1530
  %v1533 = vmul.f32 %v1532, %v1532
  %v1534 = vsub.f32 %v1533, 1.0
  %v1535 = vrsqrt.pop %v1534
  %v1536 = vmul.f32 %v1534, %v1535
  %vm1537 = vcmp.eq.f32.partialorder %v1534, inf
  %v1538 = vsel %vm1537, %v1534, %v1536
  %vm1539 = vcmp.eq.f32.partialorder %v1534, 0.0
  %v1540 = vand.u32 %v1534, 2147483648
  %v1541 = vsel %vm1539, %v1540, %v1538
  %v1542 = vadd.f32 %v1532, %v1541
  %v1543 = vlog2.pop %v1542
  %v1544 = vmul.f32 %v1543, 0.6931472
  %v1545 = vsub.f32 0.0, %v1544
  %v1546 = vmul.f32 %v1545, 1.442695
  %v1547 = vpow.pop %v1546
  %v1548 = vadd.f32 %v1292, %v1547
  %v1549 = vld [vmem:[%s0 + $0x6] sm:$0x1]
  %v1550 = vlaneseq
  %v1551 = vshrl.u32 %v1550, 7
  %v1552 = vsub.s32 0, %v1551
  %v1553 = vrot.slane %v1549, %v1552
  %vm1554 = vcmp.eq.s32.totalorder %v23, %v1553
  %vm1555 = vcmp.eq.s32.totalorder %v24, %v1553
  %vm1556 = vcmp.eq.s32.totalorder %v25, %v1553
  %vm1557 = vcmp.eq.s32.totalorder %v26, %v1553
  %vm1558 = vcmp.eq.s32.totalorder %v27, %v1553
  %vm1559 = vcmp.eq.s32.totalorder %v28, %v1553
  %vm1560 = vcmp.eq.s32.totalorder %v29, %v1553
  %vm1561 = vcmp.eq.s32.totalorder %v30, %v1553
  %vm1562 = vcmp.eq.s32.totalorder %v31, %v1553
  %vm1563 = vcmp.eq.s32.totalorder %v32, %v1553
  %vm1564 = vcmp.eq.s32.totalorder %v33, %v1553
  %vm1565 = vcmp.eq.s32.totalorder %v34, %v1553
  %vm1566 = vcmp.eq.s32.totalorder %v35, %v1553
  %vm1567 = vcmp.eq.s32.totalorder %v36, %v1553
  %vm1568 = vcmp.eq.s32.totalorder %v37, %v1553
  %vm1569 = vcmp.eq.s32.totalorder %v38, %v1553
  %v1570 = vsel %vm1554, 1, 0
  %v1571 = vsel %vm1555, 1, 0
  %v1572 = vsel %vm1556, 1, 0
  %v1573 = vsel %vm1557, 1, 0
  %v1574 = vsel %vm1558, 1, 0
  %v1575 = vsel %vm1559, 1, 0
  %v1576 = vsel %vm1560, 1, 0
  %v1577 = vsel %vm1561, 1, 0
  %v1578 = vsel %vm1562, 1, 0
  %v1579 = vsel %vm1563, 1, 0
  %v1580 = vsel %vm1564, 1, 0
  %v1581 = vsel %vm1565, 1, 0
  %v1582 = vsel %vm1566, 1, 0
  %v1583 = vsel %vm1567, 1, 0
  %v1584 = vsel %vm1568, 1, 0
  %v1585 = vsel %vm1569, 1, 0
  %v1586 = vcvt.s32.f32 %v1570
  %v1587 = vcvt.s32.f32 %v1571
  %v1588 = vcvt.s32.f32 %v1572
  %v1589 = vcvt.s32.f32 %v1573
  %v1590 = vcvt.s32.f32 %v1574
  %v1591 = vcvt.s32.f32 %v1575
  %v1592 = vcvt.s32.f32 %v1576
  %v1593 = vcvt.s32.f32 %v1577
  %v1594 = vcvt.s32.f32 %v1578
  %v1595 = vcvt.s32.f32 %v1579
  %v1596 = vcvt.s32.f32 %v1580
  %v1597 = vcvt.s32.f32 %v1581
  %v1598 = vcvt.s32.f32 %v1582
  %v1599 = vcvt.s32.f32 %v1583
  %v1600 = vcvt.s32.f32 %v1584
  %v1601 = vcvt.s32.f32 %v1585
  %1602 = vmatprep.subr.mxu0 0.0
  %1603 = vmatpush1.msra.mxu0 %v1586
  %1604 = vmatprep.subr.mxu0 0.0
  %1605 = vmatpush1.msra.mxu0 %v1587
  %1606 = vmatprep.subr.mxu0 0.0
  %1607 = vmatpush1.msra.mxu0 %v1588
  %1608 = vmatprep.subr.mxu0 0.0
  %1609 = vmatpush1.msra.mxu0 %v1589
  %1610 = vmatprep.subr.mxu0 0.0
  %1611 = vmatpush1.msra.mxu0 %v1590
  %1612 = vmatprep.subr.mxu0 0.0
  %1613 = vmatpush1.msra.mxu0 %v1591
  %1614 = vmatprep.subr.mxu0 0.0
  %1615 = vmatpush1.msra.mxu0 %v1592
  %1616 = vmatprep.subr.mxu0 0.0
  %1617 = vmatpush1.msra.mxu0 %v1593
  %1618 = vmatprep.subr.mxu0 0.0
  %1619 = vmatpush1.msra.mxu0 %v1594
  %1620 = vmatprep.subr.mxu0 0.0
  %1621 = vmatpush1.msra.mxu0 %v1595
  %1622 = vmatprep.subr.mxu0 0.0
  %1623 = vmatpush1.msra.mxu0 %v1596
  %1624 = vmatprep.subr.mxu0 0.0
  %1625 = vmatpush1.msra.mxu0 %v1597
  %1626 = vmatprep.subr.mxu0 0.0
  %1627 = vmatpush1.msra.mxu0 %v1598
  %1628 = vmatprep.subr.mxu0 0.0
  %1629 = vmatpush1.msra.mxu0 %v1599
  %1630 = vmatprep.subr.mxu0 0.0
  %1631 = vmatpush1.msra.mxu0 %v1600
  %1632 = vmatprep.subr.mxu0 0.0
  %1633 = vmatpush1.msra.mxu0 %v1601
  %1634 = vmatprep.subr.mxu0 0.0
  %1635 = vmatpush1.msra.mxu0 0.0
  %1636 = vmatprep.subr.mxu0 0.0
  %1637 = vmatpush1.msra.mxu0 0.0
  %1638 = vmatprep.subr.mxu0 0.0
  %1639 = vmatpush1.msra.mxu0 0.0
  %1640 = vmatprep.subr.mxu0 0.0
  %1641 = vmatpush1.msra.mxu0 0.0
  %1642 = vmatprep.subr.mxu0 0.0
  %1643 = vmatpush1.msra.mxu0 0.0
  %1644 = vmatprep.subr.mxu0 0.0
  %1645 = vmatpush1.msra.mxu0 0.0
  %1646 = vmatprep.subr.mxu0 0.0
  %1647 = vmatpush1.msra.mxu0 0.0
  %1648 = vmatprep.subr.mxu0 0.0
  %1649 = vmatpush1.msra.mxu0 0.0
  %1650 = vmatprep.subr.mxu0 0.0
  %1651 = vmatpush1.msra.mxu0 0.0
  %1652 = vmatprep.subr.mxu0 0.0
  %1653 = vmatpush1.msra.mxu0 0.0
  %1654 = vmatprep.subr.mxu0 0.0
  %1655 = vmatpush1.msra.mxu0 0.0
  %1656 = vmatprep.subr.mxu0 0.0
  %1657 = vmatpush1.msra.mxu0 0.0
  %1658 = vmatprep.subr.mxu0 0.0
  %1659 = vmatpush1.msra.mxu0 0.0
  %1660 = vmatprep.subr.mxu0 0.0
  %1661 = vmatpush1.msra.mxu0 0.0
  %1662 = vmatprep.subr.mxu0 0.0
  %1663 = vmatpush1.msra.mxu0 0.0
  %1664 = vmatprep.subr.mxu0 0.0
  %1665 = vmatpush1.msra.mxu0 0.0
  %1666 = vmatprep.mubr.f32.mxu0 0.0
  %1667 = vmatmul.mubr.f32.gmra.mrb[0].mxu0 %v18
  %v1668 = vpop.f32.mrb[0].mxu0
  %v1669 = vadd.f32 0.0, %v1668
  %v1670 = vpop.f32.mrb[0].mxu0
  %1671 = vmatprep.mubr.f32.mxu0 0.0
  %1672 = vmatmul.mubr.f32.gmra.mrb[0].mxu0 %v19
  %v1673 = vpop.f32.mrb[0].mxu0
  %v1674 = vadd.f32 0.0, %v1673
  %v1675 = vpop.f32.mrb[0].mxu0
  %1676 = vmatprep.mubr.f32.mxu0 0.0
  %1677 = vmatmul.mubr.f32.gmra.mrb[0].mxu0 %v20
  %v1678 = vpop.f32.mrb[0].mxu0
  %v1679 = vadd.f32 0.0, %v1678
  %v1680 = vpop.f32.mrb[0].mxu0
  %1681 = vmatprep.mubr.f32.mxu0 0.0
  %1682 = vmatmul.mubr.f32.gmra.mrb[0].mxu0 %v21
  %v1683 = vpop.f32.mrb[0].mxu0
  %v1684 = vadd.f32 0.0, %v1683
  %v1685 = vpop.f32.mrb[0].mxu0
  %1686 = vdwg.mxu0
  %1687 = vmatprep.subr.mxu0 0.0
  %1688 = vmatpush1.msra.mxu0 %v1586
  %1689 = vmatprep.subr.mxu0 0.0
  %1690 = vmatpush1.msra.mxu0 %v1587
  %1691 = vmatprep.subr.mxu0 0.0
  %1692 = vmatpush1.msra.mxu0 %v1588
  %1693 = vmatprep.subr.mxu0 0.0
  %1694 = vmatpush1.msra.mxu0 %v1589
  %1695 = vmatprep.subr.mxu0 0.0
  %1696 = vmatpush1.msra.mxu0 %v1590
  %1697 = vmatprep.subr.mxu0 0.0
  %1698 = vmatpush1.msra.mxu0 %v1591
  %1699 = vmatprep.subr.mxu0 0.0
  %1700 = vmatpush1.msra.mxu0 %v1592
  %1701 = vmatprep.subr.mxu0 0.0
  %1702 = vmatpush1.msra.mxu0 %v1593
  %1703 = vmatprep.subr.mxu0 0.0
  %1704 = vmatpush1.msra.mxu0 %v1594
  %1705 = vmatprep.subr.mxu0 0.0
  %1706 = vmatpush1.msra.mxu0 %v1595
  %1707 = vmatprep.subr.mxu0 0.0
  %1708 = vmatpush1.msra.mxu0 %v1596
  %1709 = vmatprep.subr.mxu0 0.0
  %1710 = vmatpush1.msra.mxu0 %v1597
  %1711 = vmatprep.subr.mxu0 0.0
  %1712 = vmatpush1.msra.mxu0 %v1598
  %1713 = vmatprep.subr.mxu0 0.0
  %1714 = vmatpush1.msra.mxu0 %v1599
  %1715 = vmatprep.subr.mxu0 0.0
  %1716 = vmatpush1.msra.mxu0 %v1600
  %1717 = vmatprep.subr.mxu0 0.0
  %1718 = vmatpush1.msra.mxu0 %v1601
  %1719 = vmatprep.subr.mxu0 0.0
  %1720 = vmatpush1.msra.mxu0 0.0
  %1721 = vmatprep.subr.mxu0 0.0
  %1722 = vmatpush1.msra.mxu0 0.0
  %1723 = vmatprep.subr.mxu0 0.0
  %1724 = vmatpush1.msra.mxu0 0.0
  %1725 = vmatprep.subr.mxu0 0.0
  %1726 = vmatpush1.msra.mxu0 0.0
  %1727 = vmatprep.subr.mxu0 0.0
  %1728 = vmatpush1.msra.mxu0 0.0
  %1729 = vmatprep.subr.mxu0 0.0
  %1730 = vmatpush1.msra.mxu0 0.0
  %1731 = vmatprep.subr.mxu0 0.0
  %1732 = vmatpush1.msra.mxu0 0.0
  %1733 = vmatprep.subr.mxu0 0.0
  %1734 = vmatpush1.msra.mxu0 0.0
  %1735 = vmatprep.subr.mxu0 0.0
  %1736 = vmatpush1.msra.mxu0 0.0
  %1737 = vmatprep.subr.mxu0 0.0
  %1738 = vmatpush1.msra.mxu0 0.0
  %1739 = vmatprep.subr.mxu0 0.0
  %1740 = vmatpush1.msra.mxu0 0.0
  %1741 = vmatprep.subr.mxu0 0.0
  %1742 = vmatpush1.msra.mxu0 0.0
  %1743 = vmatprep.subr.mxu0 0.0
  %1744 = vmatpush1.msra.mxu0 0.0
  %1745 = vmatprep.subr.mxu0 0.0
  %1746 = vmatpush1.msra.mxu0 0.0
  %1747 = vmatprep.subr.mxu0 0.0
  %1748 = vmatpush1.msra.mxu0 0.0
  %1749 = vmatprep.subr.mxu0 0.0
  %1750 = vmatpush1.msra.mxu0 0.0
  %1751 = vmatprep.mubr.f32.mxu0 0.0
  %1752 = vmatmul.mubr.f32.gmra.mrb[0].mxu0 %v14
  %v1753 = vpop.f32.mrb[0].mxu0
  %v1754 = vadd.f32 %v1669, %v1753
  %v1755 = vpop.f32.mrb[0].mxu0
  %1756 = vmatprep.mubr.f32.mxu0 0.0
  %1757 = vmatmul.mubr.f32.gmra.mrb[0].mxu0 %v15
  %v1758 = vpop.f32.mrb[0].mxu0
  %v1759 = vadd.f32 %v1674, %v1758
  %v1760 = vpop.f32.mrb[0].mxu0
  %1761 = vmatprep.mubr.f32.mxu0 0.0
  %1762 = vmatmul.mubr.f32.gmra.mrb[0].mxu0 %v16
  %v1763 = vpop.f32.mrb[0].mxu0
  %v1764 = vadd.f32 %v1679, %v1763
  %v1765 = vpop.f32.mrb[0].mxu0
  %1766 = vmatprep.mubr.f32.mxu0 0.0
  %1767 = vmatmul.mubr.f32.gmra.mrb[0].mxu0 %v17
  %v1768 = vpop.f32.mrb[0].mxu0
  %v1769 = vadd.f32 %v1684, %v1768
  %v1770 = vpop.f32.mrb[0].mxu0
  %1771 = vdwg.mxu0
  %v1772 = vmul.f32 %v266, %v1754
  %v1773 = vmul.f32 %v267, %v1759
  %v1774 = vmul.f32 %v268, %v1764
  %v1775 = vmul.f32 %v269, %v1769
  %v1776 = vadd.f32 %v1772, %v1773
  %v1777 = vadd.f32 %v1776, %v1774
  %v1778 = vadd.f32 %v1777, %v1775
  %v1779 = vrot.slane %v1778, 4
  %v1780 = vadd.f32 %v1778, %v1779
  %v1781 = vrot.slane %v1780, 2
  %v1782 = vadd.f32 %v1780, %v1781
  %v1783 = vrot.slane %v1782, 1
  %v1784 = vadd.f32 %v1782, %v1783
  %v1785 = vmul.f32 %v244, %v1754
  %v1786 = vsub.f32 %v1785, %v1784
  %vm1787 = vcmp.le.f32.partialorder %v1786, 1.0
  %v1788 = vsel %vm1787, 1.000001, %v1786
  %v1789 = vmul.f32 %v1788, %v1788
  %v1790 = vsub.f32 %v1789, 1.0
  %v1791 = vrsqrt.pop %v1790
  %v1792 = vmul.f32 %v1790, %v1791
  %vm1793 = vcmp.eq.f32.partialorder %v1790, inf
  %v1794 = vsel %vm1793, %v1790, %v1792
  %vm1795 = vcmp.eq.f32.partialorder %v1790, 0.0
  %v1796 = vand.u32 %v1790, 2147483648
  %v1797 = vsel %vm1795, %v1796, %v1794
  %v1798 = vadd.f32 %v1788, %v1797
  %v1799 = vlog2.pop %v1798
  %v1800 = vmul.f32 %v1799, 0.6931472
  %v1801 = vsub.f32 0.0, %v1800
  %v1802 = vmul.f32 %v1801, 1.442695
  %v1803 = vpow.pop %v1802
  %v1804 = vadd.f32 %v1548, %v1803
  %v1805 = vld [vmem:[%s0 + $0x7] sm:$0x1]
  %v1806 = vlaneseq
  %v1807 = vshrl.u32 %v1806, 7
  %v1808 = vsub.s32 0, %v1807
  %v1809 = vrot.slane %v1805, %v1808
  %vm1810 = vcmp.eq.s32.totalorder %v23, %v1809
  %vm1811 = vcmp.eq.s32.totalorder %v24, %v1809
  %vm1812 = vcmp.eq.s32.totalorder %v25, %v1809
  %vm1813 = vcmp.eq.s32.totalorder %v26, %v1809
  %vm1814 = vcmp.eq.s32.totalorder %v27, %v1809
  %vm1815 = vcmp.eq.s32.totalorder %v28, %v1809
  %vm1816 = vcmp.eq.s32.totalorder %v29, %v1809
  %vm1817 = vcmp.eq.s32.totalorder %v30, %v1809
  %vm1818 = vcmp.eq.s32.totalorder %v31, %v1809
  %vm1819 = vcmp.eq.s32.totalorder %v32, %v1809
  %vm1820 = vcmp.eq.s32.totalorder %v33, %v1809
  %vm1821 = vcmp.eq.s32.totalorder %v34, %v1809
  %vm1822 = vcmp.eq.s32.totalorder %v35, %v1809
  %vm1823 = vcmp.eq.s32.totalorder %v36, %v1809
  %vm1824 = vcmp.eq.s32.totalorder %v37, %v1809
  %vm1825 = vcmp.eq.s32.totalorder %v38, %v1809
  %v1826 = vsel %vm1810, 1, 0
  %v1827 = vsel %vm1811, 1, 0
  %v1828 = vsel %vm1812, 1, 0
  %v1829 = vsel %vm1813, 1, 0
  %v1830 = vsel %vm1814, 1, 0
  %v1831 = vsel %vm1815, 1, 0
  %v1832 = vsel %vm1816, 1, 0
  %v1833 = vsel %vm1817, 1, 0
  %v1834 = vsel %vm1818, 1, 0
  %v1835 = vsel %vm1819, 1, 0
  %v1836 = vsel %vm1820, 1, 0
  %v1837 = vsel %vm1821, 1, 0
  %v1838 = vsel %vm1822, 1, 0
  %v1839 = vsel %vm1823, 1, 0
  %v1840 = vsel %vm1824, 1, 0
  %v1841 = vsel %vm1825, 1, 0
  %v1842 = vcvt.s32.f32 %v1826
  %v1843 = vcvt.s32.f32 %v1827
  %v1844 = vcvt.s32.f32 %v1828
  %v1845 = vcvt.s32.f32 %v1829
  %v1846 = vcvt.s32.f32 %v1830
  %v1847 = vcvt.s32.f32 %v1831
  %v1848 = vcvt.s32.f32 %v1832
  %v1849 = vcvt.s32.f32 %v1833
  %v1850 = vcvt.s32.f32 %v1834
  %v1851 = vcvt.s32.f32 %v1835
  %v1852 = vcvt.s32.f32 %v1836
  %v1853 = vcvt.s32.f32 %v1837
  %v1854 = vcvt.s32.f32 %v1838
  %v1855 = vcvt.s32.f32 %v1839
  %v1856 = vcvt.s32.f32 %v1840
  %v1857 = vcvt.s32.f32 %v1841
  %1858 = vmatprep.subr.mxu0 0.0
  %1859 = vmatpush1.msra.mxu0 %v1842
  %1860 = vmatprep.subr.mxu0 0.0
  %1861 = vmatpush1.msra.mxu0 %v1843
  %1862 = vmatprep.subr.mxu0 0.0
  %1863 = vmatpush1.msra.mxu0 %v1844
  %1864 = vmatprep.subr.mxu0 0.0
  %1865 = vmatpush1.msra.mxu0 %v1845
  %1866 = vmatprep.subr.mxu0 0.0
  %1867 = vmatpush1.msra.mxu0 %v1846
  %1868 = vmatprep.subr.mxu0 0.0
  %1869 = vmatpush1.msra.mxu0 %v1847
  %1870 = vmatprep.subr.mxu0 0.0
  %1871 = vmatpush1.msra.mxu0 %v1848
  %1872 = vmatprep.subr.mxu0 0.0
  %1873 = vmatpush1.msra.mxu0 %v1849
  %1874 = vmatprep.subr.mxu0 0.0
  %1875 = vmatpush1.msra.mxu0 %v1850
  %1876 = vmatprep.subr.mxu0 0.0
  %1877 = vmatpush1.msra.mxu0 %v1851
  %1878 = vmatprep.subr.mxu0 0.0
  %1879 = vmatpush1.msra.mxu0 %v1852
  %1880 = vmatprep.subr.mxu0 0.0
  %1881 = vmatpush1.msra.mxu0 %v1853
  %1882 = vmatprep.subr.mxu0 0.0
  %1883 = vmatpush1.msra.mxu0 %v1854
  %1884 = vmatprep.subr.mxu0 0.0
  %1885 = vmatpush1.msra.mxu0 %v1855
  %1886 = vmatprep.subr.mxu0 0.0
  %1887 = vmatpush1.msra.mxu0 %v1856
  %1888 = vmatprep.subr.mxu0 0.0
  %1889 = vmatpush1.msra.mxu0 %v1857
  %1890 = vmatprep.subr.mxu0 0.0
  %1891 = vmatpush1.msra.mxu0 0.0
  %1892 = vmatprep.subr.mxu0 0.0
  %1893 = vmatpush1.msra.mxu0 0.0
  %1894 = vmatprep.subr.mxu0 0.0
  %1895 = vmatpush1.msra.mxu0 0.0
  %1896 = vmatprep.subr.mxu0 0.0
  %1897 = vmatpush1.msra.mxu0 0.0
  %1898 = vmatprep.subr.mxu0 0.0
  %1899 = vmatpush1.msra.mxu0 0.0
  %1900 = vmatprep.subr.mxu0 0.0
  %1901 = vmatpush1.msra.mxu0 0.0
  %1902 = vmatprep.subr.mxu0 0.0
  %1903 = vmatpush1.msra.mxu0 0.0
  %1904 = vmatprep.subr.mxu0 0.0
  %1905 = vmatpush1.msra.mxu0 0.0
  %1906 = vmatprep.subr.mxu0 0.0
  %1907 = vmatpush1.msra.mxu0 0.0
  %1908 = vmatprep.subr.mxu0 0.0
  %1909 = vmatpush1.msra.mxu0 0.0
  %1910 = vmatprep.subr.mxu0 0.0
  %1911 = vmatpush1.msra.mxu0 0.0
  %1912 = vmatprep.subr.mxu0 0.0
  %1913 = vmatpush1.msra.mxu0 0.0
  %1914 = vmatprep.subr.mxu0 0.0
  %1915 = vmatpush1.msra.mxu0 0.0
  %1916 = vmatprep.subr.mxu0 0.0
  %1917 = vmatpush1.msra.mxu0 0.0
  %1918 = vmatprep.subr.mxu0 0.0
  %1919 = vmatpush1.msra.mxu0 0.0
  %1920 = vmatprep.subr.mxu0 0.0
  %1921 = vmatpush1.msra.mxu0 0.0
  %1922 = vmatprep.mubr.f32.mxu0 0.0
  %1923 = vmatmul.mubr.f32.gmra.mrb[0].mxu0 %v18
  %v1924 = vpop.f32.mrb[0].mxu0
  %v1925 = vadd.f32 0.0, %v1924
  %v1926 = vpop.f32.mrb[0].mxu0
  %1927 = vmatprep.mubr.f32.mxu0 0.0
  %1928 = vmatmul.mubr.f32.gmra.mrb[0].mxu0 %v19
  %v1929 = vpop.f32.mrb[0].mxu0
  %v1930 = vadd.f32 0.0, %v1929
  %v1931 = vpop.f32.mrb[0].mxu0
  %1932 = vmatprep.mubr.f32.mxu0 0.0
  %1933 = vmatmul.mubr.f32.gmra.mrb[0].mxu0 %v20
  %v1934 = vpop.f32.mrb[0].mxu0
  %v1935 = vadd.f32 0.0, %v1934
  %v1936 = vpop.f32.mrb[0].mxu0
  %1937 = vmatprep.mubr.f32.mxu0 0.0
  %1938 = vmatmul.mubr.f32.gmra.mrb[0].mxu0 %v21
  %v1939 = vpop.f32.mrb[0].mxu0
  %v1940 = vadd.f32 0.0, %v1939
  %v1941 = vpop.f32.mrb[0].mxu0
  %1942 = vdwg.mxu0
  %1943 = vmatprep.subr.mxu0 0.0
  %1944 = vmatpush1.msra.mxu0 %v1842
  %1945 = vmatprep.subr.mxu0 0.0
  %1946 = vmatpush1.msra.mxu0 %v1843
  %1947 = vmatprep.subr.mxu0 0.0
  %1948 = vmatpush1.msra.mxu0 %v1844
  %1949 = vmatprep.subr.mxu0 0.0
  %1950 = vmatpush1.msra.mxu0 %v1845
  %1951 = vmatprep.subr.mxu0 0.0
  %1952 = vmatpush1.msra.mxu0 %v1846
  %1953 = vmatprep.subr.mxu0 0.0
  %1954 = vmatpush1.msra.mxu0 %v1847
  %1955 = vmatprep.subr.mxu0 0.0
  %1956 = vmatpush1.msra.mxu0 %v1848
  %1957 = vmatprep.subr.mxu0 0.0
  %1958 = vmatpush1.msra.mxu0 %v1849
  %1959 = vmatprep.subr.mxu0 0.0
  %1960 = vmatpush1.msra.mxu0 %v1850
  %1961 = vmatprep.subr.mxu0 0.0
  %1962 = vmatpush1.msra.mxu0 %v1851
  %1963 = vmatprep.subr.mxu0 0.0
  %1964 = vmatpush1.msra.mxu0 %v1852
  %1965 = vmatprep.subr.mxu0 0.0
  %1966 = vmatpush1.msra.mxu0 %v1853
  %1967 = vmatprep.subr.mxu0 0.0
  %1968 = vmatpush1.msra.mxu0 %v1854
  %1969 = vmatprep.subr.mxu0 0.0
  %1970 = vmatpush1.msra.mxu0 %v1855
  %1971 = vmatprep.subr.mxu0 0.0
  %1972 = vmatpush1.msra.mxu0 %v1856
  %1973 = vmatprep.subr.mxu0 0.0
  %1974 = vmatpush1.msra.mxu0 %v1857
  %1975 = vmatprep.subr.mxu0 0.0
  %1976 = vmatpush1.msra.mxu0 0.0
  %1977 = vmatprep.subr.mxu0 0.0
  %1978 = vmatpush1.msra.mxu0 0.0
  %1979 = vmatprep.subr.mxu0 0.0
  %1980 = vmatpush1.msra.mxu0 0.0
  %1981 = vmatprep.subr.mxu0 0.0
  %1982 = vmatpush1.msra.mxu0 0.0
  %1983 = vmatprep.subr.mxu0 0.0
  %1984 = vmatpush1.msra.mxu0 0.0
  %1985 = vmatprep.subr.mxu0 0.0
  %1986 = vmatpush1.msra.mxu0 0.0
  %1987 = vmatprep.subr.mxu0 0.0
  %1988 = vmatpush1.msra.mxu0 0.0
  %1989 = vmatprep.subr.mxu0 0.0
  %1990 = vmatpush1.msra.mxu0 0.0
  %1991 = vmatprep.subr.mxu0 0.0
  %1992 = vmatpush1.msra.mxu0 0.0
  %1993 = vmatprep.subr.mxu0 0.0
  %1994 = vmatpush1.msra.mxu0 0.0
  %1995 = vmatprep.subr.mxu0 0.0
  %1996 = vmatpush1.msra.mxu0 0.0
  %1997 = vmatprep.subr.mxu0 0.0
  %1998 = vmatpush1.msra.mxu0 0.0
  %1999 = vmatprep.subr.mxu0 0.0
  %2000 = vmatpush1.msra.mxu0 0.0
  %2001 = vmatprep.subr.mxu0 0.0
  %2002 = vmatpush1.msra.mxu0 0.0
  %2003 = vmatprep.subr.mxu0 0.0
  %2004 = vmatpush1.msra.mxu0 0.0
  %2005 = vmatprep.subr.mxu0 0.0
  %2006 = vmatpush1.msra.mxu0 0.0
  %2007 = vmatprep.mubr.f32.mxu0 0.0
  %2008 = vmatmul.mubr.f32.gmra.mrb[0].mxu0 %v14
  %v2009 = vpop.f32.mrb[0].mxu0
  %v2010 = vadd.f32 %v1925, %v2009
  %v2011 = vpop.f32.mrb[0].mxu0
  %2012 = vmatprep.mubr.f32.mxu0 0.0
  %2013 = vmatmul.mubr.f32.gmra.mrb[0].mxu0 %v15
  %v2014 = vpop.f32.mrb[0].mxu0
  %v2015 = vadd.f32 %v1930, %v2014
  %v2016 = vpop.f32.mrb[0].mxu0
  %2017 = vmatprep.mubr.f32.mxu0 0.0
  %2018 = vmatmul.mubr.f32.gmra.mrb[0].mxu0 %v16
  %v2019 = vpop.f32.mrb[0].mxu0
  %v2020 = vadd.f32 %v1935, %v2019
  %v2021 = vpop.f32.mrb[0].mxu0
  %2022 = vmatprep.mubr.f32.mxu0 0.0
  %2023 = vmatmul.mubr.f32.gmra.mrb[0].mxu0 %v17
  %v2024 = vpop.f32.mrb[0].mxu0
  %v2025 = vadd.f32 %v1940, %v2024
  %v2026 = vpop.f32.mrb[0].mxu0
  %2027 = vdwg.mxu0
  %v2028 = vmul.f32 %v266, %v2010
  %v2029 = vmul.f32 %v267, %v2015
  %v2030 = vmul.f32 %v268, %v2020
  %v2031 = vmul.f32 %v269, %v2025
  %v2032 = vadd.f32 %v2028, %v2029
  %v2033 = vadd.f32 %v2032, %v2030
  %v2034 = vadd.f32 %v2033, %v2031
  %v2035 = vrot.slane %v2034, 4
  %v2036 = vadd.f32 %v2034, %v2035
  %v2037 = vrot.slane %v2036, 2
  %v2038 = vadd.f32 %v2036, %v2037
  %v2039 = vrot.slane %v2038, 1
  %v2040 = vadd.f32 %v2038, %v2039
  %v2041 = vmul.f32 %v244, %v2010
  %v2042 = vsub.f32 %v2041, %v2040
  %vm2043 = vcmp.le.f32.partialorder %v2042, 1.0
  %v2044 = vsel %vm2043, 1.000001, %v2042
  %v2045 = vmul.f32 %v2044, %v2044
  %v2046 = vsub.f32 %v2045, 1.0
  %v2047 = vrsqrt.pop %v2046
  %v2048 = vmul.f32 %v2046, %v2047
  %vm2049 = vcmp.eq.f32.partialorder %v2046, inf
  %v2050 = vsel %vm2049, %v2046, %v2048
  %vm2051 = vcmp.eq.f32.partialorder %v2046, 0.0
  %v2052 = vand.u32 %v2046, 2147483648
  %v2053 = vsel %vm2051, %v2052, %v2050
  %v2054 = vadd.f32 %v2044, %v2053
  %v2055 = vlog2.pop %v2054
  %v2056 = vmul.f32 %v2055, 0.6931472
  %v2057 = vsub.f32 0.0, %v2056
  %v2058 = vmul.f32 %v2057, 1.442695
  %v2059 = vpow.pop %v2058
  %v2060 = vadd.f32 %v1804, %v2059
  %v2061 = vld [vmem:[%s0 + $0x8] sm:$0x1]
  %v2062 = vlaneseq
  %v2063 = vshrl.u32 %v2062, 7
  %v2064 = vsub.s32 0, %v2063
  %v2065 = vrot.slane %v2061, %v2064
  %vm2066 = vcmp.eq.s32.totalorder %v23, %v2065
  %vm2067 = vcmp.eq.s32.totalorder %v24, %v2065
  %vm2068 = vcmp.eq.s32.totalorder %v25, %v2065
  %vm2069 = vcmp.eq.s32.totalorder %v26, %v2065
  %vm2070 = vcmp.eq.s32.totalorder %v27, %v2065
  %vm2071 = vcmp.eq.s32.totalorder %v28, %v2065
  %vm2072 = vcmp.eq.s32.totalorder %v29, %v2065
  %vm2073 = vcmp.eq.s32.totalorder %v30, %v2065
  %vm2074 = vcmp.eq.s32.totalorder %v31, %v2065
  %vm2075 = vcmp.eq.s32.totalorder %v32, %v2065
  %vm2076 = vcmp.eq.s32.totalorder %v33, %v2065
  %vm2077 = vcmp.eq.s32.totalorder %v34, %v2065
  %vm2078 = vcmp.eq.s32.totalorder %v35, %v2065
  %vm2079 = vcmp.eq.s32.totalorder %v36, %v2065
  %vm2080 = vcmp.eq.s32.totalorder %v37, %v2065
  %vm2081 = vcmp.eq.s32.totalorder %v38, %v2065
  %v2082 = vsel %vm2066, 1, 0
  %v2083 = vsel %vm2067, 1, 0
  %v2084 = vsel %vm2068, 1, 0
  %v2085 = vsel %vm2069, 1, 0
  %v2086 = vsel %vm2070, 1, 0
  %v2087 = vsel %vm2071, 1, 0
  %v2088 = vsel %vm2072, 1, 0
  %v2089 = vsel %vm2073, 1, 0
  %v2090 = vsel %vm2074, 1, 0
  %v2091 = vsel %vm2075, 1, 0
  %v2092 = vsel %vm2076, 1, 0
  %v2093 = vsel %vm2077, 1, 0
  %v2094 = vsel %vm2078, 1, 0
  %v2095 = vsel %vm2079, 1, 0
  %v2096 = vsel %vm2080, 1, 0
  %v2097 = vsel %vm2081, 1, 0
  %v2098 = vcvt.s32.f32 %v2082
  %v2099 = vcvt.s32.f32 %v2083
  %v2100 = vcvt.s32.f32 %v2084
  %v2101 = vcvt.s32.f32 %v2085
  %v2102 = vcvt.s32.f32 %v2086
  %v2103 = vcvt.s32.f32 %v2087
  %v2104 = vcvt.s32.f32 %v2088
  %v2105 = vcvt.s32.f32 %v2089
  %v2106 = vcvt.s32.f32 %v2090
  %v2107 = vcvt.s32.f32 %v2091
  %v2108 = vcvt.s32.f32 %v2092
  %v2109 = vcvt.s32.f32 %v2093
  %v2110 = vcvt.s32.f32 %v2094
  %v2111 = vcvt.s32.f32 %v2095
  %v2112 = vcvt.s32.f32 %v2096
  %v2113 = vcvt.s32.f32 %v2097
  %2114 = vmatprep.subr.mxu0 0.0
  %2115 = vmatpush1.msra.mxu0 %v2098
  %2116 = vmatprep.subr.mxu0 0.0
  %2117 = vmatpush1.msra.mxu0 %v2099
  %2118 = vmatprep.subr.mxu0 0.0
  %2119 = vmatpush1.msra.mxu0 %v2100
  %2120 = vmatprep.subr.mxu0 0.0
  %2121 = vmatpush1.msra.mxu0 %v2101
  %2122 = vmatprep.subr.mxu0 0.0
  %2123 = vmatpush1.msra.mxu0 %v2102
  %2124 = vmatprep.subr.mxu0 0.0
  %2125 = vmatpush1.msra.mxu0 %v2103
  %2126 = vmatprep.subr.mxu0 0.0
  %2127 = vmatpush1.msra.mxu0 %v2104
  %2128 = vmatprep.subr.mxu0 0.0
  %2129 = vmatpush1.msra.mxu0 %v2105
  %2130 = vmatprep.subr.mxu0 0.0
  %2131 = vmatpush1.msra.mxu0 %v2106
  %2132 = vmatprep.subr.mxu0 0.0
  %2133 = vmatpush1.msra.mxu0 %v2107
  %2134 = vmatprep.subr.mxu0 0.0
  %2135 = vmatpush1.msra.mxu0 %v2108
  %2136 = vmatprep.subr.mxu0 0.0
  %2137 = vmatpush1.msra.mxu0 %v2109
  %2138 = vmatprep.subr.mxu0 0.0
  %2139 = vmatpush1.msra.mxu0 %v2110
  %2140 = vmatprep.subr.mxu0 0.0
  %2141 = vmatpush1.msra.mxu0 %v2111
  %2142 = vmatprep.subr.mxu0 0.0
  %2143 = vmatpush1.msra.mxu0 %v2112
  %2144 = vmatprep.subr.mxu0 0.0
  %2145 = vmatpush1.msra.mxu0 %v2113
  %2146 = vmatprep.subr.mxu0 0.0
  %2147 = vmatpush1.msra.mxu0 0.0
  %2148 = vmatprep.subr.mxu0 0.0
  %2149 = vmatpush1.msra.mxu0 0.0
  %2150 = vmatprep.subr.mxu0 0.0
  %2151 = vmatpush1.msra.mxu0 0.0
  %2152 = vmatprep.subr.mxu0 0.0
  %2153 = vmatpush1.msra.mxu0 0.0
  %2154 = vmatprep.subr.mxu0 0.0
  %2155 = vmatpush1.msra.mxu0 0.0
  %2156 = vmatprep.subr.mxu0 0.0
  %2157 = vmatpush1.msra.mxu0 0.0
  %2158 = vmatprep.subr.mxu0 0.0
  %2159 = vmatpush1.msra.mxu0 0.0
  %2160 = vmatprep.subr.mxu0 0.0
  %2161 = vmatpush1.msra.mxu0 0.0
  %2162 = vmatprep.subr.mxu0 0.0
  %2163 = vmatpush1.msra.mxu0 0.0
  %2164 = vmatprep.subr.mxu0 0.0
  %2165 = vmatpush1.msra.mxu0 0.0
  %2166 = vmatprep.subr.mxu0 0.0
  %2167 = vmatpush1.msra.mxu0 0.0
  %2168 = vmatprep.subr.mxu0 0.0
  %2169 = vmatpush1.msra.mxu0 0.0
  %2170 = vmatprep.subr.mxu0 0.0
  %2171 = vmatpush1.msra.mxu0 0.0
  %2172 = vmatprep.subr.mxu0 0.0
  %2173 = vmatpush1.msra.mxu0 0.0
  %2174 = vmatprep.subr.mxu0 0.0
  %2175 = vmatpush1.msra.mxu0 0.0
  %2176 = vmatprep.subr.mxu0 0.0
  %2177 = vmatpush1.msra.mxu0 0.0
  %2178 = vmatprep.mubr.f32.mxu0 0.0
  %2179 = vmatmul.mubr.f32.gmra.mrb[0].mxu0 %v18
  %v2180 = vpop.f32.mrb[0].mxu0
  %v2181 = vadd.f32 0.0, %v2180
  %v2182 = vpop.f32.mrb[0].mxu0
  %2183 = vmatprep.mubr.f32.mxu0 0.0
  %2184 = vmatmul.mubr.f32.gmra.mrb[0].mxu0 %v19
  %v2185 = vpop.f32.mrb[0].mxu0
  %v2186 = vadd.f32 0.0, %v2185
  %v2187 = vpop.f32.mrb[0].mxu0
  %2188 = vmatprep.mubr.f32.mxu0 0.0
  %2189 = vmatmul.mubr.f32.gmra.mrb[0].mxu0 %v20
  %v2190 = vpop.f32.mrb[0].mxu0
  %v2191 = vadd.f32 0.0, %v2190
  %v2192 = vpop.f32.mrb[0].mxu0
  %2193 = vmatprep.mubr.f32.mxu0 0.0
  %2194 = vmatmul.mubr.f32.gmra.mrb[0].mxu0 %v21
  %v2195 = vpop.f32.mrb[0].mxu0
  %v2196 = vadd.f32 0.0, %v2195
  %v2197 = vpop.f32.mrb[0].mxu0
  %2198 = vdwg.mxu0
  %2199 = vmatprep.subr.mxu0 0.0
  %2200 = vmatpush1.msra.mxu0 %v2098
  %2201 = vmatprep.subr.mxu0 0.0
  %2202 = vmatpush1.msra.mxu0 %v2099
  %2203 = vmatprep.subr.mxu0 0.0
  %2204 = vmatpush1.msra.mxu0 %v2100
  %2205 = vmatprep.subr.mxu0 0.0
  %2206 = vmatpush1.msra.mxu0 %v2101
  %2207 = vmatprep.subr.mxu0 0.0
  %2208 = vmatpush1.msra.mxu0 %v2102
  %2209 = vmatprep.subr.mxu0 0.0
  %2210 = vmatpush1.msra.mxu0 %v2103
  %2211 = vmatprep.subr.mxu0 0.0
  %2212 = vmatpush1.msra.mxu0 %v2104
  %2213 = vmatprep.subr.mxu0 0.0
  %2214 = vmatpush1.msra.mxu0 %v2105
  %2215 = vmatprep.subr.mxu0 0.0
  %2216 = vmatpush1.msra.mxu0 %v2106
  %2217 = vmatprep.subr.mxu0 0.0
  %2218 = vmatpush1.msra.mxu0 %v2107
  %2219 = vmatprep.subr.mxu0 0.0
  %2220 = vmatpush1.msra.mxu0 %v2108
  %2221 = vmatprep.subr.mxu0 0.0
  %2222 = vmatpush1.msra.mxu0 %v2109
  %2223 = vmatprep.subr.mxu0 0.0
  %2224 = vmatpush1.msra.mxu0 %v2110
  %2225 = vmatprep.subr.mxu0 0.0
  %2226 = vmatpush1.msra.mxu0 %v2111
  %2227 = vmatprep.subr.mxu0 0.0
  %2228 = vmatpush1.msra.mxu0 %v2112
  %2229 = vmatprep.subr.mxu0 0.0
  %2230 = vmatpush1.msra.mxu0 %v2113
  %2231 = vmatprep.subr.mxu0 0.0
  %2232 = vmatpush1.msra.mxu0 0.0
  %2233 = vmatprep.subr.mxu0 0.0
  %2234 = vmatpush1.msra.mxu0 0.0
  %2235 = vmatprep.subr.mxu0 0.0
  %2236 = vmatpush1.msra.mxu0 0.0
  %2237 = vmatprep.subr.mxu0 0.0
  %2238 = vmatpush1.msra.mxu0 0.0
  %2239 = vmatprep.subr.mxu0 0.0
  %2240 = vmatpush1.msra.mxu0 0.0
  %2241 = vmatprep.subr.mxu0 0.0
  %2242 = vmatpush1.msra.mxu0 0.0
  %2243 = vmatprep.subr.mxu0 0.0
  %2244 = vmatpush1.msra.mxu0 0.0
  %2245 = vmatprep.subr.mxu0 0.0
  %2246 = vmatpush1.msra.mxu0 0.0
  %2247 = vmatprep.subr.mxu0 0.0
  %2248 = vmatpush1.msra.mxu0 0.0
  %2249 = vmatprep.subr.mxu0 0.0
  %2250 = vmatpush1.msra.mxu0 0.0
  %2251 = vmatprep.subr.mxu0 0.0
  %2252 = vmatpush1.msra.mxu0 0.0
  %2253 = vmatprep.subr.mxu0 0.0
  %2254 = vmatpush1.msra.mxu0 0.0
  %2255 = vmatprep.subr.mxu0 0.0
  %2256 = vmatpush1.msra.mxu0 0.0
  %2257 = vmatprep.subr.mxu0 0.0
  %2258 = vmatpush1.msra.mxu0 0.0
  %2259 = vmatprep.subr.mxu0 0.0
  %2260 = vmatpush1.msra.mxu0 0.0
  %2261 = vmatprep.subr.mxu0 0.0
  %2262 = vmatpush1.msra.mxu0 0.0
  %2263 = vmatprep.mubr.f32.mxu0 0.0
  %2264 = vmatmul.mubr.f32.gmra.mrb[0].mxu0 %v14
  %v2265 = vpop.f32.mrb[0].mxu0
  %v2266 = vadd.f32 %v2181, %v2265
  %v2267 = vpop.f32.mrb[0].mxu0
  %2268 = vmatprep.mubr.f32.mxu0 0.0
  %2269 = vmatmul.mubr.f32.gmra.mrb[0].mxu0 %v15
  %v2270 = vpop.f32.mrb[0].mxu0
  %v2271 = vadd.f32 %v2186, %v2270
  %v2272 = vpop.f32.mrb[0].mxu0
  %2273 = vmatprep.mubr.f32.mxu0 0.0
  %2274 = vmatmul.mubr.f32.gmra.mrb[0].mxu0 %v16
  %v2275 = vpop.f32.mrb[0].mxu0
  %v2276 = vadd.f32 %v2191, %v2275
  %v2277 = vpop.f32.mrb[0].mxu0
  %2278 = vmatprep.mubr.f32.mxu0 0.0
  %2279 = vmatmul.mubr.f32.gmra.mrb[0].mxu0 %v17
  %v2280 = vpop.f32.mrb[0].mxu0
  %v2281 = vadd.f32 %v2196, %v2280
  %v2282 = vpop.f32.mrb[0].mxu0
  %2283 = vdwg.mxu0
  %v2284 = vmul.f32 %v266, %v2266
  %v2285 = vmul.f32 %v267, %v2271
  %v2286 = vmul.f32 %v268, %v2276
  %v2287 = vmul.f32 %v269, %v2281
  %v2288 = vadd.f32 %v2284, %v2285
  %v2289 = vadd.f32 %v2288, %v2286
  %v2290 = vadd.f32 %v2289, %v2287
  %v2291 = vrot.slane %v2290, 4
  %v2292 = vadd.f32 %v2290, %v2291
  %v2293 = vrot.slane %v2292, 2
  %v2294 = vadd.f32 %v2292, %v2293
  %v2295 = vrot.slane %v2294, 1
  %v2296 = vadd.f32 %v2294, %v2295
  %v2297 = vmul.f32 %v244, %v2266
  %v2298 = vsub.f32 %v2297, %v2296
  %vm2299 = vcmp.le.f32.partialorder %v2298, 1.0
  %v2300 = vsel %vm2299, 1.000001, %v2298
  %v2301 = vmul.f32 %v2300, %v2300
  %v2302 = vsub.f32 %v2301, 1.0
  %v2303 = vrsqrt.pop %v2302
  %v2304 = vmul.f32 %v2302, %v2303
  %vm2305 = vcmp.eq.f32.partialorder %v2302, inf
  %v2306 = vsel %vm2305, %v2302, %v2304
  %vm2307 = vcmp.eq.f32.partialorder %v2302, 0.0
  %v2308 = vand.u32 %v2302, 2147483648
  %v2309 = vsel %vm2307, %v2308, %v2306
  %v2310 = vadd.f32 %v2300, %v2309
  %v2311 = vlog2.pop %v2310
  %v2312 = vmul.f32 %v2311, 0.6931472
  %v2313 = vsub.f32 0.0, %v2312
  %v2314 = vmul.f32 %v2313, 1.442695
  %v2315 = vpow.pop %v2314
  %v2316 = vadd.f32 %v2060, %v2315
  %v2317 = vadd.f32 %v2316, 1e-06
  %v2318 = vlog2.pop %v2317
  %v2319 = vmul.f32 %v2318, 0.6931472
  %v2320 = vsub.f32 %v522, %v2319
  %v2321 = vsub.f32 0.0, %v2320
  %2322 = vst [vmem:[%s3] sm:$0x1] %v2321
  // Predicated region
  $region14: #{lorentz_forward.1} parent=0 // pred_check
    _
  $region15: #{lorentz_forward.1} parent=0 // pred_check_branch
    %2324 = sbr.rel (0) target = $region17
  $region16: #{lorentz_forward.1} parent=0 // pred_region
    _
  $region17: #{lorentz_forward.1} parent=0 // pred_fallthru
    _
  // Predicated region
  $region18: #{lorentz_forward.1} parent=0 // pred_check
    _
  $region19: #{lorentz_forward.1} parent=0 // pred_check_branch
    %2326 = sbr.rel (0) target = $region21
  $region20: #{lorentz_forward.1} parent=0 // pred_region
    _
  $region21: #{lorentz_forward.1} parent=0 // pred_fallthru
    _

</llo_original>
